<compile_context>
chip_gen: v5e
topology: v5e:2x2
jax: 0.10.0
libtpu: 0.0.40
codegen_flags: <defaults>
</compile_context>

<pallas_src>
import jax
import jax.numpy as jnp
from jax.experimental import pallas as pl
from jax.experimental.pallas import tpu as pltpu  # noqa: F401  (TPU backend assumed)

# ---- synthetic MiniLM-like config (small) ----
V = 100        # vocab size
B = 2          # batch
S = 8          # sequence length
BS = B * S     # flattened batch*seq rows
D = 32         # hidden size
H = 4          # attention heads
DH = D // H    # head dim
FF = 64        # feed-forward size
L = 2          # encoder layers
LN_EPS = 1e-12
ATTN_SCALE = 1.0 / (DH ** 0.5)


def _layer_norm(x, g, b, eps=LN_EPS):
    mu = jnp.mean(x, axis=-1, keepdims=True)
    xc = x - mu
    var = jnp.mean(xc * xc, axis=-1, keepdims=True)
    return xc * jax.lax.rsqrt(var + eps) * g + b


def _erf(x):
    # Abramowitz & Stegun 7.1.26, |error| < 1.5e-7: exact-GELU fidelity using only
    # ops (exp, mul/add, abs, where) that lower cleanly in Mosaic.
    a1, a2, a3, a4, a5 = 0.254829592, -0.284496736, 1.421413741, -1.453152027, 1.061405429
    p = 0.3275911
    sign = jnp.where(x >= 0.0, 1.0, -1.0)
    ax = jnp.abs(x)
    t = 1.0 / (1.0 + p * ax)
    poly = ((((a5 * t + a4) * t + a3) * t + a2) * t + a1) * t
    return sign * (1.0 - poly * jnp.exp(-ax * ax))


def _gelu_exact(x):
    # HuggingFace BERT/MiniLM uses exact erf GELU (not the tanh approximation).
    return 0.5 * x * (1.0 + _erf(x * 0.7071067811865476))


# ----------------------- fused kernel -----------------------

def text_encoder_kernel(emb_ref, bias_ref, pool_ref, embg_ref, embb_ref,
                        wqkv_ref, bqkv_ref, wo_ref, bo_ref,
                        w1_ref, b1_ref, w2_ref, b2_ref,
                        ln1g_ref, ln1b_ref, ln2g_ref, ln2b_ref,
                        out_ref):
    # Embedding layer-norm over the whole flattened batch at once: [B*S, D].
    h = _layer_norm(emb_ref[...], embg_ref[...], embb_ref[...])

    # Additive attention bias (blocks cross-batch and padded keys), hoisted once.
    bias = bias_ref[...][None, :, :]                           # [1, BS, BS]

    for l in range(L):                                         # static unroll (L=2)
        # ---------------- self attention ----------------
        qkv = jnp.dot(h, wqkv_ref[l],
                      preferred_element_type=jnp.float32) + bqkv_ref[l]   # [BS, 3D]
        q = qkv[:, 0 * D:1 * D]
        k = qkv[:, 1 * D:2 * D]
        v = qkv[:, 2 * D:3 * D]
        # Head-major stacks [H, BS, DH] so scores / softmax / context are single
        # leading-batch-dim einsums (no per-head matmul loop, no lane concat).
        qh = jnp.stack([q[:, hh * DH:(hh + 1) * DH] for hh in range(H)], axis=0)
        kh = jnp.stack([k[:, hh * DH:(hh + 1) * DH] for hh in range(H)], axis=0)
        vh = jnp.stack([v[:, hh * DH:(hh + 1) * DH] for hh in range(H)], axis=0)

        s = jnp.einsum('hqd,hkd->hqk', qh, kh,
                       preferred_element_type=jnp.float32) * ATTN_SCALE + bias
        s = s - jnp.max(s, axis=-1, keepdims=True)
        p = jnp.exp(s)
        p = p * pl.reciprocal(jnp.sum(p, axis=-1, keepdims=True), approx=True)
        ctx = jnp.einsum('hqk,hkd->hqd', p, vh,
                         preferred_element_type=jnp.float32)              # [H, BS, DH]

        # Head-major output projection: wo_ref[l] is [H, DH, D]; sum over heads
        # replaces the lane-axis concatenate.
        attn = jnp.einsum('hqd,hde->hqe', ctx, wo_ref[l],
                          preferred_element_type=jnp.float32)             # [H, BS, D]
        attn = jnp.sum(attn, axis=0) + bo_ref[l]                          # [BS, D]
        h1 = _layer_norm(h + attn, ln1g_ref[l], ln1b_ref[l])

        # ---------------- feed forward ----------------
        f = jnp.dot(h1, w1_ref[l], preferred_element_type=jnp.float32) + b1_ref[l]
        f = _gelu_exact(f)
        f = jnp.dot(f, w2_ref[l], preferred_element_type=jnp.float32) + b2_ref[l]
        h = _layer_norm(h1 + f, ln2g_ref[l], ln2b_ref[l])

    # ---------------- masked mean pooling + L2 normalize ----------------
    pool = pool_ref[...]                                                  # [B, BS]
    summed = jnp.dot(pool, h, preferred_element_type=jnp.float32)         # [B, D]
    count = jnp.maximum(jnp.sum(pool, axis=-1, keepdims=True), 1e-9)      # [B, 1]
    mean = summed * pl.reciprocal(count, approx=True)   # scale error cancels in L2 norm
    norm = jnp.sqrt(jnp.sum(mean * mean, axis=-1, keepdims=True))
    out_ref[...] = mean / jnp.maximum(norm, 1e-12)       # exact F.normalize semantics


# ----------------------- wrapper -----------------------

def text_encoder_forward(input_ids, attention_mask, params):
    """input_ids: [B, S] int32; attention_mask: [B, S]; returns [B, D] float32."""
    word_emb, pos_emb, type_emb, emb_ln_g, emb_ln_b, stacked = params

    # Embedding lookup is glue (gathers); everything after runs in one kernel.
    emb = (word_emb[input_ids]
           + pos_emb[None, :, :]
           + type_emb[0][None, None, :]).astype(jnp.float32).reshape(BS, D)

    mask = attention_mask.astype(jnp.float32)                    # [B, S]
    same_b = jnp.eye(B, dtype=jnp.float32)                       # [B, B]
    allowed = same_b[:, :, None] * mask[None, :, :]              # [B, B, S]
    # Additive bias over flattened rows/cols: query b*S+i may attend key b'*S+j
    # iff b == b' and key j is valid.
    attn_bias = (1.0 - jnp.broadcast_to(allowed[:, None, :, :],
                                        (B, S, B, S)).reshape(BS, BS)) * (-1e9)
    pool_mat = allowed.reshape(B, BS)                            # masked-mean weights

    return pl.pallas_call(
        text_encoder_kernel,
        out_shape=jax.ShapeDtypeStruct((B, D), jnp.float32),
        # No grid / no BlockSpecs: whole (tiny) arrays are mapped to VMEM for a
        # single fused invocation; weights are DMA'd from HBM exactly once.
    )(emb, attn_bias, pool_mat, emb_ln_g, emb_ln_b, *stacked)


# ----------------------- parameters -----------------------

def make_params():
    key = jax.random.PRNGKey(42)
    keys = iter(jax.random.split(key, 64))

    def nrm(shape, scale=0.05):
        return (scale * jax.random.normal(next(keys), shape)).astype(jnp.float32)

    word_emb = nrm((V, D))
    pos_emb = nrm((S, D))
    type_emb = nrm((2, D))
    emb_ln_g = jnp.ones((1, D), jnp.float32)
    emb_ln_b = jnp.zeros((1, D), jnp.float32)

    # Per-layer weights stacked along a leading L axis so the fused kernel reads
    # layer l with a static ref[l]; QKV fused along the output dim.
    wq, wk, wv = nrm((L, D, D)), nrm((L, D, D)), nrm((L, D, D))
    wqkv = jnp.concatenate([wq, wk, wv], axis=-1)                # [L, D, 3D]
    bqkv = nrm((L, 1, 3 * D), 0.02)
    wo = nrm((L, D, D)).reshape(L, H, DH, D)                     # head-major row split
    bo = nrm((L, 1, D), 0.02)
    w1 = nrm((L, D, FF))
    b1 = nrm((L, 1, FF), 0.02)
    w2 = nrm((L, FF, D))
    b2 = nrm((L, 1, D), 0.02)
    ln1g = jnp.ones((L, 1, D), jnp.float32)
    ln1b = jnp.zeros((L, 1, D), jnp.float32)
    ln2g = jnp.ones((L, 1, D), jnp.float32)
    ln2b = jnp.zeros((L, 1, D), jnp.float32)
    stacked = (wqkv, bqkv, wo, bo, w1, b1, w2, b2, ln1g, ln1b, ln2g, ln2b)
    return word_emb, pos_emb, type_emb, emb_ln_g, emb_ln_b, stacked


# ----------------------- pure-JAX reference -----------------------

def reference_forward(input_ids, attention_mask, params):
    word_emb, pos_emb, type_emb, emb_ln_g, emb_ln_b, stacked = params
    wqkv, bqkv, wo, bo, w1, b1, w2, b2, ln1g, ln1b, ln2g, ln2b = stacked

    def ln(x, g, b):
        mu = jnp.mean(x, axis=-1, keepdims=True)
        xc = x - mu
        var = jnp.mean(xc * xc, axis=-1, keepdims=True)
        return xc / jnp.sqrt(var + LN_EPS) * g + b

    x = word_emb[input_ids] + pos_emb[None] + type_emb[0][None, None]
    h = ln(x, emb_ln_g, emb_ln_b)                                  # [B, S, D]
    mask = attention_mask.astype(jnp.float32)
    kbias = (1.0 - mask)[:, None, None, :] * (-1e9)                # [B, 1, 1, S]
    for l in range(L):
        qkv = h @ wqkv[l] + bqkv[l]
        q, k, v = qkv[..., :D], qkv[..., D:2 * D], qkv[..., 2 * D:]
        q = q.reshape(B, S, H, DH).transpose(0, 2, 1, 3)
        k = k.reshape(B, S, H, DH).transpose(0, 2, 1, 3)
        v = v.reshape(B, S, H, DH).transpose(0, 2, 1, 3)
        s = q @ k.transpose(0, 1, 3, 2) * ATTN_SCALE + kbias
        p = jax.nn.softmax(s, axis=-1)
        ctx = (p @ v).transpose(0, 2, 1, 3).reshape(B, S, D)
        attn = ctx @ wo[l].reshape(D, D) + bo[l]
        h1 = ln(h + attn, ln1g[l], ln1b[l])
        f = jax.nn.gelu(h1 @ w1[l] + b1[l], approximate=False)
        f = f @ w2[l] + b2[l]
        h = ln(h1 + f, ln2g[l], ln2b[l])
    m = mask[:, :, None]
    mean = (h * m).sum(1) / jnp.maximum(mask.sum(-1, keepdims=True), 1e-9)
    norm = jnp.linalg.norm(mean, axis=-1, keepdims=True)
    return mean / jnp.maximum(norm, 1e-12)


# ----------------------- main -----------------------

if __name__ == "__main__":
    params = make_params()

    key = jax.random.PRNGKey(0)
    input_ids = jax.random.randint(key, (B, S), 0, V, dtype=jnp.int32)
    lengths = jnp.array([S, 5], dtype=jnp.int32)               # ragged "sentences"
    attention_mask = (jnp.arange(S)[None, :] < lengths[:, None]).astype(jnp.float32)

    fwd = jax.jit(text_encoder_forward)
    out = jax.block_until_ready(fwd(input_ids, attention_mask, params))

    assert out.shape == (B, D) and out.dtype == jnp.float32
    # Sentence embeddings are L2-normalized (final normalize is exact).
    norms = jnp.linalg.norm(out, axis=-1)
    assert bool(jnp.all(jnp.abs(norms - 1.0) < 1e-4))

    # Matches the pure-JAX reference (loose tol covers the approx-EUP reciprocal
    # used inside softmax).
    ref = reference_forward(input_ids, attention_mask, params)
    assert bool(jnp.max(jnp.abs(out - ref)) < 2e-2)

    print("KERNEL_OK")
</pallas_src>

<mosaic_0001>
module attributes {stable_mosaic.version = 11 : i64} {
  func.func @text_encoder_kernel(%arg0: memref<16x32xf32, #tpu.memory_space<vmem>>, %arg1: memref<16x16xf32, #tpu.memory_space<vmem>>, %arg2: memref<2x16xf32, #tpu.memory_space<vmem>>, %arg3: memref<1x32xf32, #tpu.memory_space<vmem>>, %arg4: memref<1x32xf32, #tpu.memory_space<vmem>>, %arg5: memref<2x32x96xf32, #tpu.memory_space<vmem>>, %arg6: memref<2x1x96xf32, #tpu.memory_space<vmem>>, %arg7: memref<2x4x8x32xf32, #tpu.memory_space<vmem>>, %arg8: memref<2x1x32xf32, #tpu.memory_space<vmem>>, %arg9: memref<2x32x64xf32, #tpu.memory_space<vmem>>, %arg10: memref<2x1x64xf32, #tpu.memory_space<vmem>>, %arg11: memref<2x64x32xf32, #tpu.memory_space<vmem>>, %arg12: memref<2x1x32xf32, #tpu.memory_space<vmem>>, %arg13: memref<2x1x32xf32, #tpu.memory_space<vmem>>, %arg14: memref<2x1x32xf32, #tpu.memory_space<vmem>>, %arg15: memref<2x1x32xf32, #tpu.memory_space<vmem>>, %arg16: memref<2x1x32xf32, #tpu.memory_space<vmem>>, %arg17: memref<2x32xf32, #tpu.memory_space<vmem>>) attributes {dimension_semantics = [], scalar_prefetch = 0 : i64, scratch_operands = 0 : i64, tpu.core_type = #tpu.core_type<tc>} {
    %c0 = arith.constant 0 : index
    %c0_0 = arith.constant 0 : index
    %0 = vector.load %arg0[%c0, %c0_0] : memref<16x32xf32, #tpu.memory_space<vmem>>, vector<16x32xf32>
    %c0_1 = arith.constant 0 : index
    %c0_2 = arith.constant 0 : index
    %1 = vector.load %arg3[%c0_1, %c0_2] : memref<1x32xf32, #tpu.memory_space<vmem>>, vector<1x32xf32>
    %c0_3 = arith.constant 0 : index
    %c0_4 = arith.constant 0 : index
    %2 = vector.load %arg4[%c0_3, %c0_4] : memref<1x32xf32, #tpu.memory_space<vmem>>, vector<1x32xf32>
    %cst = arith.constant dense<0.000000e+00> : vector<16xf32>
    %3 = vector.multi_reduction <add>, %0, %cst [1] : vector<16x32xf32> to vector<16xf32>
    %4 = vector.shape_cast %3 : vector<16xf32> to vector<16x1xf32>
    %cst_5 = arith.constant 3.200000e+01 : f32
    %5 = vector.broadcast %cst_5 : f32 to vector<16x1xf32>
    %6 = arith.divf %4, %5 : vector<16x1xf32>
    %7 = vector.broadcast %6 : vector<16x1xf32> to vector<16x32xf32>
    %8 = arith.subf %0, %7 : vector<16x32xf32>
    %9 = arith.mulf %8, %8 : vector<16x32xf32>
    %cst_6 = arith.constant dense<0.000000e+00> : vector<16xf32>
    %10 = vector.multi_reduction <add>, %9, %cst_6 [1] : vector<16x32xf32> to vector<16xf32>
    %11 = vector.shape_cast %10 : vector<16xf32> to vector<16x1xf32>
    %cst_7 = arith.constant 3.200000e+01 : f32
    %12 = vector.broadcast %cst_7 : f32 to vector<16x1xf32>
    %13 = arith.divf %11, %12 : vector<16x1xf32>
    %cst_8 = arith.constant 9.99999996E-13 : f32
    %14 = vector.broadcast %cst_8 : f32 to vector<16x1xf32>
    %15 = arith.addf %13, %14 : vector<16x1xf32>
    %16 = math.rsqrt %15 : vector<16x1xf32>
    %17 = vector.broadcast %16 : vector<16x1xf32> to vector<16x32xf32>
    %18 = arith.mulf %8, %17 : vector<16x32xf32>
    %19 = vector.broadcast %1 : vector<1x32xf32> to vector<16x32xf32>
    %20 = arith.mulf %18, %19 : vector<16x32xf32>
    %21 = vector.broadcast %2 : vector<1x32xf32> to vector<16x32xf32>
    %22 = arith.addf %20, %21 : vector<16x32xf32>
    %c0_9 = arith.constant 0 : index
    %c0_10 = arith.constant 0 : index
    %23 = vector.load %arg1[%c0_9, %c0_10] : memref<16x16xf32, #tpu.memory_space<vmem>>, vector<16x16xf32>
    %24 = vector.shape_cast %23 : vector<16x16xf32> to vector<1x16x16xf32>
    %c0_11 = arith.constant 0 : index
    %c0_12 = arith.constant 0 : index
    %c0_13 = arith.constant 0 : index
    %25 = vector.load %arg5[%c0_11, %c0_12, %c0_13] : memref<2x32x96xf32, #tpu.memory_space<vmem>>, vector<1x32x96xf32>
    %26 = vector.shape_cast %25 : vector<1x32x96xf32> to vector<32x96xf32>
    %cst_14 = arith.constant dense<0.000000e+00> : vector<16x96xf32>
    %27 = tpu.matmul %22, %26, %cst_14 {dimension_numbers = #tpu.dot_dimension_numbers<[1], [0], [0], [1], [0, 0, 1, 1], [], []>} : vector<16x32xf32>, vector<32x96xf32>, vector<16x96xf32> -> vector<16x96xf32>
    %c0_15 = arith.constant 0 : index
    %c0_16 = arith.constant 0 : index
    %c0_17 = arith.constant 0 : index
    %28 = vector.load %arg6[%c0_15, %c0_16, %c0_17] : memref<2x1x96xf32, #tpu.memory_space<vmem>>, vector<1x1x96xf32>
    %29 = vector.shape_cast %28 : vector<1x1x96xf32> to vector<1x96xf32>
    %30 = vector.broadcast %29 : vector<1x96xf32> to vector<16x96xf32>
    %31 = arith.addf %27, %30 : vector<16x96xf32>
    %32 = vector.extract_strided_slice %31 {offsets = [0, 0], sizes = [16, 32], strides = [1, 1]} : vector<16x96xf32> to vector<16x32xf32>
    %33 = vector.extract_strided_slice %31 {offsets = [0, 32], sizes = [16, 32], strides = [1, 1]} : vector<16x96xf32> to vector<16x32xf32>
    %34 = vector.extract_strided_slice %31 {offsets = [0, 64], sizes = [16, 32], strides = [1, 1]} : vector<16x96xf32> to vector<16x32xf32>
    %35 = vector.extract_strided_slice %32 {offsets = [0, 0], sizes = [16, 8], strides = [1, 1]} : vector<16x32xf32> to vector<16x8xf32>
    %36 = vector.extract_strided_slice %32 {offsets = [0, 8], sizes = [16, 8], strides = [1, 1]} : vector<16x32xf32> to vector<16x8xf32>
    %37 = vector.extract_strided_slice %32 {offsets = [0, 16], sizes = [16, 8], strides = [1, 1]} : vector<16x32xf32> to vector<16x8xf32>
    %38 = vector.extract_strided_slice %32 {offsets = [0, 24], sizes = [16, 8], strides = [1, 1]} : vector<16x32xf32> to vector<16x8xf32>
    %39 = vector.shape_cast %35 : vector<16x8xf32> to vector<1x16x8xf32>
    %40 = vector.shape_cast %36 : vector<16x8xf32> to vector<1x16x8xf32>
    %41 = vector.shape_cast %37 : vector<16x8xf32> to vector<1x16x8xf32>
    %42 = vector.shape_cast %38 : vector<16x8xf32> to vector<1x16x8xf32>
    %43 = tpu.concatenate %39, %40, %41, %42 in 0 : vector<1x16x8xf32>, vector<1x16x8xf32>, vector<1x16x8xf32>, vector<1x16x8xf32> -> vector<4x16x8xf32>
    %44 = vector.extract_strided_slice %33 {offsets = [0, 0], sizes = [16, 8], strides = [1, 1]} : vector<16x32xf32> to vector<16x8xf32>
    %45 = vector.extract_strided_slice %33 {offsets = [0, 8], sizes = [16, 8], strides = [1, 1]} : vector<16x32xf32> to vector<16x8xf32>
    %46 = vector.extract_strided_slice %33 {offsets = [0, 16], sizes = [16, 8], strides = [1, 1]} : vector<16x32xf32> to vector<16x8xf32>
    %47 = vector.extract_strided_slice %33 {offsets = [0, 24], sizes = [16, 8], strides = [1, 1]} : vector<16x32xf32> to vector<16x8xf32>
    %48 = vector.shape_cast %44 : vector<16x8xf32> to vector<1x16x8xf32>
    %49 = vector.shape_cast %45 : vector<16x8xf32> to vector<1x16x8xf32>
    %50 = vector.shape_cast %46 : vector<16x8xf32> to vector<1x16x8xf32>
    %51 = vector.shape_cast %47 : vector<16x8xf32> to vector<1x16x8xf32>
    %52 = tpu.concatenate %48, %49, %50, %51 in 0 : vector<1x16x8xf32>, vector<1x16x8xf32>, vector<1x16x8xf32>, vector<1x16x8xf32> -> vector<4x16x8xf32>
    %53 = vector.extract_strided_slice %34 {offsets = [0, 0], sizes = [16, 8], strides = [1, 1]} : vector<16x32xf32> to vector<16x8xf32>
    %54 = vector.extract_strided_slice %34 {offsets = [0, 8], sizes = [16, 8], strides = [1, 1]} : vector<16x32xf32> to vector<16x8xf32>
    %55 = vector.extract_strided_slice %34 {offsets = [0, 16], sizes = [16, 8], strides = [1, 1]} : vector<16x32xf32> to vector<16x8xf32>
    %56 = vector.extract_strided_slice %34 {offsets = [0, 24], sizes = [16, 8], strides = [1, 1]} : vector<16x32xf32> to vector<16x8xf32>
    %57 = vector.shape_cast %53 : vector<16x8xf32> to vector<1x16x8xf32>
    %58 = vector.shape_cast %54 : vector<16x8xf32> to vector<1x16x8xf32>
    %59 = vector.shape_cast %55 : vector<16x8xf32> to vector<1x16x8xf32>
    %60 = vector.shape_cast %56 : vector<16x8xf32> to vector<1x16x8xf32>
    %61 = tpu.concatenate %57, %58, %59, %60 in 0 : vector<1x16x8xf32>, vector<1x16x8xf32>, vector<1x16x8xf32>, vector<1x16x8xf32> -> vector<4x16x8xf32>
    "tpu.trace_start"() <{level = 10 : i32, message = "hqd,hkd->hqk"}> : () -> ()
    %cst_18 = arith.constant dense<0.000000e+00> : vector<4x16x16xf32>
    %62 = tpu.matmul %43, %52, %cst_18 {dimension_numbers = #tpu.dot_dimension_numbers<[2], [2], [1], [1], [0, 0, 0, 1, 1, 1], [0], [0]>} : vector<4x16x8xf32>, vector<4x16x8xf32>, vector<4x16x16xf32> -> vector<4x16x16xf32>
    "tpu.trace_stop"() : () -> ()
    %cst_19 = arith.constant 0.353553385 : f32
    %63 = vector.broadcast %cst_19 : f32 to vector<4x16x16xf32>
    %64 = arith.mulf %62, %63 : vector<4x16x16xf32>
    %65 = vector.broadcast %24 : vector<1x16x16xf32> to vector<4x16x16xf32>
    %66 = arith.addf %64, %65 : vector<4x16x16xf32>
    %cst_20 = arith.constant dense<0xFF800000> : vector<4x16xf32>
    %67 = vector.multi_reduction <maximumf>, %66, %cst_20 [2] : vector<4x16x16xf32> to vector<4x16xf32>
    %68 = vector.shape_cast %67 : vector<4x16xf32> to vector<4x16x1xf32>
    %69 = vector.broadcast %68 : vector<4x16x1xf32> to vector<4x16x16xf32>
    %70 = arith.subf %66, %69 : vector<4x16x16xf32>
    %71 = math.exp %70 : vector<4x16x16xf32>
    %cst_21 = arith.constant dense<0.000000e+00> : vector<4x16xf32>
    %72 = vector.multi_reduction <add>, %71, %cst_21 [2] : vector<4x16x16xf32> to vector<4x16xf32>
    %73 = vector.shape_cast %72 : vector<4x16xf32> to vector<4x16x1xf32>
    %74 = tpu.reciprocal %73 {approx = true} : vector<4x16x1xf32> -> vector<4x16x1xf32>
    %75 = vector.broadcast %74 : vector<4x16x1xf32> to vector<4x16x16xf32>
    %76 = arith.mulf %71, %75 : vector<4x16x16xf32>
    "tpu.trace_start"() <{level = 10 : i32, message = "hqk,hkd->hqd"}> : () -> ()
    %cst_22 = arith.constant dense<0.000000e+00> : vector<4x16x8xf32>
    %77 = tpu.matmul %76, %61, %cst_22 {dimension_numbers = #tpu.dot_dimension_numbers<[2], [1], [1], [2], [0, 0, 0, 1, 1, 2], [0], [0]>} : vector<4x16x16xf32>, vector<4x16x8xf32>, vector<4x16x8xf32> -> vector<4x16x8xf32>
    "tpu.trace_stop"() : () -> ()
    %c0_23 = arith.constant 0 : index
    %c0_24 = arith.constant 0 : index
    %c0_25 = arith.constant 0 : index
    %c0_26 = arith.constant 0 : index
    %78 = vector.load %arg7[%c0_23, %c0_24, %c0_25, %c0_26] : memref<2x4x8x32xf32, #tpu.memory_space<vmem>>, vector<1x4x8x32xf32>
    %79 = vector.shape_cast %78 : vector<1x4x8x32xf32> to vector<4x8x32xf32>
    "tpu.trace_start"() <{level = 10 : i32, message = "hqd,hde->hqe"}> : () -> ()
    %cst_27 = arith.constant dense<0.000000e+00> : vector<4x16x32xf32>
    %80 = tpu.matmul %77, %79, %cst_27 {dimension_numbers = #tpu.dot_dimension_numbers<[2], [1], [1], [2], [0, 0, 0, 1, 1, 2], [0], [0]>} : vector<4x16x8xf32>, vector<4x8x32xf32>, vector<4x16x32xf32> -> vector<4x16x32xf32>
    "tpu.trace_stop"() : () -> ()
    %cst_28 = arith.constant dense<0.000000e+00> : vector<16x32xf32>
    %81 = vector.multi_reduction <add>, %80, %cst_28 [0] : vector<4x16x32xf32> to vector<16x32xf32>
    %c0_29 = arith.constant 0 : index
    %c0_30 = arith.constant 0 : index
    %c0_31 = arith.constant 0 : index
    %82 = vector.load %arg8[%c0_29, %c0_30, %c0_31] : memref<2x1x32xf32, #tpu.memory_space<vmem>>, vector<1x1x32xf32>
    %83 = vector.shape_cast %82 : vector<1x1x32xf32> to vector<1x32xf32>
    %84 = vector.broadcast %83 : vector<1x32xf32> to vector<16x32xf32>
    %85 = arith.addf %81, %84 : vector<16x32xf32>
    %86 = arith.addf %22, %85 : vector<16x32xf32>
    %c0_32 = arith.constant 0 : index
    %c0_33 = arith.constant 0 : index
    %c0_34 = arith.constant 0 : index
    %87 = vector.load %arg13[%c0_32, %c0_33, %c0_34] : memref<2x1x32xf32, #tpu.memory_space<vmem>>, vector<1x1x32xf32>
    %88 = vector.shape_cast %87 : vector<1x1x32xf32> to vector<1x32xf32>
    %c0_35 = arith.constant 0 : index
    %c0_36 = arith.constant 0 : index
    %c0_37 = arith.constant 0 : index
    %89 = vector.load %arg14[%c0_35, %c0_36, %c0_37] : memref<2x1x32xf32, #tpu.memory_space<vmem>>, vector<1x1x32xf32>
    %90 = vector.shape_cast %89 : vector<1x1x32xf32> to vector<1x32xf32>
    %cst_38 = arith.constant dense<0.000000e+00> : vector<16xf32>
    %91 = vector.multi_reduction <add>, %86, %cst_38 [1] : vector<16x32xf32> to vector<16xf32>
    %92 = vector.shape_cast %91 : vector<16xf32> to vector<16x1xf32>
    %cst_39 = arith.constant 3.200000e+01 : f32
    %93 = vector.broadcast %cst_39 : f32 to vector<16x1xf32>
    %94 = arith.divf %92, %93 : vector<16x1xf32>
    %95 = vector.broadcast %94 : vector<16x1xf32> to vector<16x32xf32>
    %96 = arith.subf %86, %95 : vector<16x32xf32>
    %97 = arith.mulf %96, %96 : vector<16x32xf32>
    %cst_40 = arith.constant dense<0.000000e+00> : vector<16xf32>
    %98 = vector.multi_reduction <add>, %97, %cst_40 [1] : vector<16x32xf32> to vector<16xf32>
    %99 = vector.shape_cast %98 : vector<16xf32> to vector<16x1xf32>
    %cst_41 = arith.constant 3.200000e+01 : f32
    %100 = vector.broadcast %cst_41 : f32 to vector<16x1xf32>
    %101 = arith.divf %99, %100 : vector<16x1xf32>
    %cst_42 = arith.constant 9.99999996E-13 : f32
    %102 = vector.broadcast %cst_42 : f32 to vector<16x1xf32>
    %103 = arith.addf %101, %102 : vector<16x1xf32>
    %104 = math.rsqrt %103 : vector<16x1xf32>
    %105 = vector.broadcast %104 : vector<16x1xf32> to vector<16x32xf32>
    %106 = arith.mulf %96, %105 : vector<16x32xf32>
    %107 = vector.broadcast %88 : vector<1x32xf32> to vector<16x32xf32>
    %108 = arith.mulf %106, %107 : vector<16x32xf32>
    %109 = vector.broadcast %90 : vector<1x32xf32> to vector<16x32xf32>
    %110 = arith.addf %108, %109 : vector<16x32xf32>
    %c0_43 = arith.constant 0 : index
    %c0_44 = arith.constant 0 : index
    %c0_45 = arith.constant 0 : index
    %111 = vector.load %arg9[%c0_43, %c0_44, %c0_45] : memref<2x32x64xf32, #tpu.memory_space<vmem>>, vector<1x32x64xf32>
    %112 = vector.shape_cast %111 : vector<1x32x64xf32> to vector<32x64xf32>
    %cst_46 = arith.constant dense<0.000000e+00> : vector<16x64xf32>
    %113 = tpu.matmul %110, %112, %cst_46 {dimension_numbers = #tpu.dot_dimension_numbers<[1], [0], [0], [1], [0, 0, 1, 1], [], []>} : vector<16x32xf32>, vector<32x64xf32>, vector<16x64xf32> -> vector<16x64xf32>
    %c0_47 = arith.constant 0 : index
    %c0_48 = arith.constant 0 : index
    %c0_49 = arith.constant 0 : index
    %114 = vector.load %arg10[%c0_47, %c0_48, %c0_49] : memref<2x1x64xf32, #tpu.memory_space<vmem>>, vector<1x1x64xf32>
    %115 = vector.shape_cast %114 : vector<1x1x64xf32> to vector<1x64xf32>
    %116 = vector.broadcast %115 : vector<1x64xf32> to vector<16x64xf32>
    %117 = arith.addf %113, %116 : vector<16x64xf32>
    %cst_50 = arith.constant 5.000000e-01 : f32
    %118 = vector.broadcast %cst_50 : f32 to vector<16x64xf32>
    %119 = arith.mulf %118, %117 : vector<16x64xf32>
    %cst_51 = arith.constant 0.707106769 : f32
    %120 = vector.broadcast %cst_51 : f32 to vector<16x64xf32>
    %121 = arith.mulf %117, %120 : vector<16x64xf32>
    %cst_52 = arith.constant 0.000000e+00 : f32
    %122 = vector.broadcast %cst_52 : f32 to vector<16x64xf32>
    %123 = arith.cmpf oge, %121, %122 : vector<16x64xf32>
    %cst_53 = arith.constant 1.000000e+00 : f32
    %cst_54 = arith.constant -1.000000e+00 : f32
    %124 = vector.broadcast %cst_53 : f32 to vector<16x64xf32>
    %125 = vector.broadcast %cst_54 : f32 to vector<16x64xf32>
    %126 = arith.select %123, %124, %125 : vector<16x64xi1>, vector<16x64xf32>
    %127 = math.absf %121 : vector<16x64xf32>
    %cst_55 = arith.constant 0.327591091 : f32
    %128 = vector.broadcast %cst_55 : f32 to vector<16x64xf32>
    %129 = arith.mulf %128, %127 : vector<16x64xf32>
    %cst_56 = arith.constant 1.000000e+00 : f32
    %130 = vector.broadcast %cst_56 : f32 to vector<16x64xf32>
    %131 = arith.addf %130, %129 : vector<16x64xf32>
    %cst_57 = arith.constant 1.000000e+00 : f32
    %132 = vector.broadcast %cst_57 : f32 to vector<16x64xf32>
    %133 = arith.divf %132, %131 : vector<16x64xf32>
    %cst_58 = arith.constant 1.06140542 : f32
    %134 = vector.broadcast %cst_58 : f32 to vector<16x64xf32>
    %135 = arith.mulf %134, %133 : vector<16x64xf32>
    %cst_59 = arith.constant -1.45315206 : f32
    %136 = vector.broadcast %cst_59 : f32 to vector<16x64xf32>
    %137 = arith.addf %135, %136 : vector<16x64xf32>
    %138 = arith.mulf %137, %133 : vector<16x64xf32>
    %cst_60 = arith.constant 1.42141378 : f32
    %139 = vector.broadcast %cst_60 : f32 to vector<16x64xf32>
    %140 = arith.addf %138, %139 : vector<16x64xf32>
    %141 = arith.mulf %140, %133 : vector<16x64xf32>
    %cst_61 = arith.constant -0.284496725 : f32
    %142 = vector.broadcast %cst_61 : f32 to vector<16x64xf32>
    %143 = arith.addf %141, %142 : vector<16x64xf32>
    %144 = arith.mulf %143, %133 : vector<16x64xf32>
    %cst_62 = arith.constant 0.254829586 : f32
    %145 = vector.broadcast %cst_62 : f32 to vector<16x64xf32>
    %146 = arith.addf %144, %145 : vector<16x64xf32>
    %147 = arith.mulf %146, %133 : vector<16x64xf32>
    %cst_63 = arith.constant 0.000000e+00 : f32
    %148 = vector.broadcast %cst_63 : f32 to vector<16x64xf32>
    %149 = arith.subf %148, %127 : vector<16x64xf32>
    %150 = arith.mulf %149, %127 : vector<16x64xf32>
    %151 = math.exp %150 : vector<16x64xf32>
    %152 = arith.mulf %147, %151 : vector<16x64xf32>
    %cst_64 = arith.constant 1.000000e+00 : f32
    %153 = vector.broadcast %cst_64 : f32 to vector<16x64xf32>
    %154 = arith.subf %153, %152 : vector<16x64xf32>
    %155 = arith.mulf %126, %154 : vector<16x64xf32>
    %cst_65 = arith.constant 1.000000e+00 : f32
    %156 = vector.broadcast %cst_65 : f32 to vector<16x64xf32>
    %157 = arith.addf %156, %155 : vector<16x64xf32>
    %158 = arith.mulf %119, %157 : vector<16x64xf32>
    %c0_66 = arith.constant 0 : index
    %c0_67 = arith.constant 0 : index
    %c0_68 = arith.constant 0 : index
    %159 = vector.load %arg11[%c0_66, %c0_67, %c0_68] : memref<2x64x32xf32, #tpu.memory_space<vmem>>, vector<1x64x32xf32>
    %160 = vector.shape_cast %159 : vector<1x64x32xf32> to vector<64x32xf32>
    %cst_69 = arith.constant dense<0.000000e+00> : vector<16x32xf32>
    %161 = tpu.matmul %158, %160, %cst_69 {dimension_numbers = #tpu.dot_dimension_numbers<[1], [0], [0], [1], [0, 0, 1, 1], [], []>} : vector<16x64xf32>, vector<64x32xf32>, vector<16x32xf32> -> vector<16x32xf32>
    %c0_70 = arith.constant 0 : index
    %c0_71 = arith.constant 0 : index
    %c0_72 = arith.constant 0 : index
    %162 = vector.load %arg12[%c0_70, %c0_71, %c0_72] : memref<2x1x32xf32, #tpu.memory_space<vmem>>, vector<1x1x32xf32>
    %163 = vector.shape_cast %162 : vector<1x1x32xf32> to vector<1x32xf32>
    %164 = vector.broadcast %163 : vector<1x32xf32> to vector<16x32xf32>
    %165 = arith.addf %161, %164 : vector<16x32xf32>
    %166 = arith.addf %110, %165 : vector<16x32xf32>
    %c0_73 = arith.constant 0 : index
    %c0_74 = arith.constant 0 : index
    %c0_75 = arith.constant 0 : index
    %167 = vector.load %arg15[%c0_73, %c0_74, %c0_75] : memref<2x1x32xf32, #tpu.memory_space<vmem>>, vector<1x1x32xf32>
    %168 = vector.shape_cast %167 : vector<1x1x32xf32> to vector<1x32xf32>
    %c0_76 = arith.constant 0 : index
    %c0_77 = arith.constant 0 : index
    %c0_78 = arith.constant 0 : index
    %169 = vector.load %arg16[%c0_76, %c0_77, %c0_78] : memref<2x1x32xf32, #tpu.memory_space<vmem>>, vector<1x1x32xf32>
    %170 = vector.shape_cast %169 : vector<1x1x32xf32> to vector<1x32xf32>
    %cst_79 = arith.constant dense<0.000000e+00> : vector<16xf32>
    %171 = vector.multi_reduction <add>, %166, %cst_79 [1] : vector<16x32xf32> to vector<16xf32>
    %172 = vector.shape_cast %171 : vector<16xf32> to vector<16x1xf32>
    %cst_80 = arith.constant 3.200000e+01 : f32
    %173 = vector.broadcast %cst_80 : f32 to vector<16x1xf32>
    %174 = arith.divf %172, %173 : vector<16x1xf32>
    %175 = vector.broadcast %174 : vector<16x1xf32> to vector<16x32xf32>
    %176 = arith.subf %166, %175 : vector<16x32xf32>
    %177 = arith.mulf %176, %176 : vector<16x32xf32>
    %cst_81 = arith.constant dense<0.000000e+00> : vector<16xf32>
    %178 = vector.multi_reduction <add>, %177, %cst_81 [1] : vector<16x32xf32> to vector<16xf32>
    %179 = vector.shape_cast %178 : vector<16xf32> to vector<16x1xf32>
    %cst_82 = arith.constant 3.200000e+01 : f32
    %180 = vector.broadcast %cst_82 : f32 to vector<16x1xf32>
    %181 = arith.divf %179, %180 : vector<16x1xf32>
    %cst_83 = arith.constant 9.99999996E-13 : f32
    %182 = vector.broadcast %cst_83 : f32 to vector<16x1xf32>
    %183 = arith.addf %181, %182 : vector<16x1xf32>
    %184 = math.rsqrt %183 : vector<16x1xf32>
    %185 = vector.broadcast %184 : vector<16x1xf32> to vector<16x32xf32>
    %186 = arith.mulf %176, %185 : vector<16x32xf32>
    %187 = vector.broadcast %168 : vector<1x32xf32> to vector<16x32xf32>
    %188 = arith.mulf %186, %187 : vector<16x32xf32>
    %189 = vector.broadcast %170 : vector<1x32xf32> to vector<16x32xf32>
    %190 = arith.addf %188, %189 : vector<16x32xf32>
    %c1 = arith.constant 1 : index
    %c0_84 = arith.constant 0 : index
    %c0_85 = arith.constant 0 : index
    %191 = vector.load %arg5[%c1, %c0_84, %c0_85] : memref<2x32x96xf32, #tpu.memory_space<vmem>>, vector<1x32x96xf32>
    %192 = vector.shape_cast %191 : vector<1x32x96xf32> to vector<32x96xf32>
    %cst_86 = arith.constant dense<0.000000e+00> : vector<16x96xf32>
    %193 = tpu.matmul %190, %192, %cst_86 {dimension_numbers = #tpu.dot_dimension_numbers<[1], [0], [0], [1], [0, 0, 1, 1], [], []>} : vector<16x32xf32>, vector<32x96xf32>, vector<16x96xf32> -> vector<16x96xf32>
    %c1_87 = arith.constant 1 : index
    %c0_88 = arith.constant 0 : index
    %c0_89 = arith.constant 0 : index
    %194 = vector.load %arg6[%c1_87, %c0_88, %c0_89] : memref<2x1x96xf32, #tpu.memory_space<vmem>>, vector<1x1x96xf32>
    %195 = vector.shape_cast %194 : vector<1x1x96xf32> to vector<1x96xf32>
    %196 = vector.broadcast %195 : vector<1x96xf32> to vector<16x96xf32>
    %197 = arith.addf %193, %196 : vector<16x96xf32>
    %198 = vector.extract_strided_slice %197 {offsets = [0, 0], sizes = [16, 32], strides = [1, 1]} : vector<16x96xf32> to vector<16x32xf32>
    %199 = vector.extract_strided_slice %197 {offsets = [0, 32], sizes = [16, 32], strides = [1, 1]} : vector<16x96xf32> to vector<16x32xf32>
    %200 = vector.extract_strided_slice %197 {offsets = [0, 64], sizes = [16, 32], strides = [1, 1]} : vector<16x96xf32> to vector<16x32xf32>
    %201 = vector.extract_strided_slice %198 {offsets = [0, 0], sizes = [16, 8], strides = [1, 1]} : vector<16x32xf32> to vector<16x8xf32>
    %202 = vector.extract_strided_slice %198 {offsets = [0, 8], sizes = [16, 8], strides = [1, 1]} : vector<16x32xf32> to vector<16x8xf32>
    %203 = vector.extract_strided_slice %198 {offsets = [0, 16], sizes = [16, 8], strides = [1, 1]} : vector<16x32xf32> to vector<16x8xf32>
    %204 = vector.extract_strided_slice %198 {offsets = [0, 24], sizes = [16, 8], strides = [1, 1]} : vector<16x32xf32> to vector<16x8xf32>
    %205 = vector.shape_cast %201 : vector<16x8xf32> to vector<1x16x8xf32>
    %206 = vector.shape_cast %202 : vector<16x8xf32> to vector<1x16x8xf32>
    %207 = vector.shape_cast %203 : vector<16x8xf32> to vector<1x16x8xf32>
    %208 = vector.shape_cast %204 : vector<16x8xf32> to vector<1x16x8xf32>
    %209 = tpu.concatenate %205, %206, %207, %208 in 0 : vector<1x16x8xf32>, vector<1x16x8xf32>, vector<1x16x8xf32>, vector<1x16x8xf32> -> vector<4x16x8xf32>
    %210 = vector.extract_strided_slice %199 {offsets = [0, 0], sizes = [16, 8], strides = [1, 1]} : vector<16x32xf32> to vector<16x8xf32>
    %211 = vector.extract_strided_slice %199 {offsets = [0, 8], sizes = [16, 8], strides = [1, 1]} : vector<16x32xf32> to vector<16x8xf32>
    %212 = vector.extract_strided_slice %199 {offsets = [0, 16], sizes = [16, 8], strides = [1, 1]} : vector<16x32xf32> to vector<16x8xf32>
    %213 = vector.extract_strided_slice %199 {offsets = [0, 24], sizes = [16, 8], strides = [1, 1]} : vector<16x32xf32> to vector<16x8xf32>
    %214 = vector.shape_cast %210 : vector<16x8xf32> to vector<1x16x8xf32>
    %215 = vector.shape_cast %211 : vector<16x8xf32> to vector<1x16x8xf32>
    %216 = vector.shape_cast %212 : vector<16x8xf32> to vector<1x16x8xf32>
    %217 = vector.shape_cast %213 : vector<16x8xf32> to vector<1x16x8xf32>
    %218 = tpu.concatenate %214, %215, %216, %217 in 0 : vector<1x16x8xf32>, vector<1x16x8xf32>, vector<1x16x8xf32>, vector<1x16x8xf32> -> vector<4x16x8xf32>
    %219 = vector.extract_strided_slice %200 {offsets = [0, 0], sizes = [16, 8], strides = [1, 1]} : vector<16x32xf32> to vector<16x8xf32>
    %220 = vector.extract_strided_slice %200 {offsets = [0, 8], sizes = [16, 8], strides = [1, 1]} : vector<16x32xf32> to vector<16x8xf32>
    %221 = vector.extract_strided_slice %200 {offsets = [0, 16], sizes = [16, 8], strides = [1, 1]} : vector<16x32xf32> to vector<16x8xf32>
    %222 = vector.extract_strided_slice %200 {offsets = [0, 24], sizes = [16, 8], strides = [1, 1]} : vector<16x32xf32> to vector<16x8xf32>
    %223 = vector.shape_cast %219 : vector<16x8xf32> to vector<1x16x8xf32>
    %224 = vector.shape_cast %220 : vector<16x8xf32> to vector<1x16x8xf32>
    %225 = vector.shape_cast %221 : vector<16x8xf32> to vector<1x16x8xf32>
    %226 = vector.shape_cast %222 : vector<16x8xf32> to vector<1x16x8xf32>
    %227 = tpu.concatenate %223, %224, %225, %226 in 0 : vector<1x16x8xf32>, vector<1x16x8xf32>, vector<1x16x8xf32>, vector<1x16x8xf32> -> vector<4x16x8xf32>
    "tpu.trace_start"() <{level = 10 : i32, message = "hqd,hkd->hqk"}> : () -> ()
    %cst_90 = arith.constant dense<0.000000e+00> : vector<4x16x16xf32>
    %228 = tpu.matmul %209, %218, %cst_90 {dimension_numbers = #tpu.dot_dimension_numbers<[2], [2], [1], [1], [0, 0, 0, 1, 1, 1], [0], [0]>} : vector<4x16x8xf32>, vector<4x16x8xf32>, vector<4x16x16xf32> -> vector<4x16x16xf32>
    "tpu.trace_stop"() : () -> ()
    %cst_91 = arith.constant 0.353553385 : f32
    %229 = vector.broadcast %cst_91 : f32 to vector<4x16x16xf32>
    %230 = arith.mulf %228, %229 : vector<4x16x16xf32>
    %231 = vector.broadcast %24 : vector<1x16x16xf32> to vector<4x16x16xf32>
    %232 = arith.addf %230, %231 : vector<4x16x16xf32>
    %cst_92 = arith.constant dense<0xFF800000> : vector<4x16xf32>
    %233 = vector.multi_reduction <maximumf>, %232, %cst_92 [2] : vector<4x16x16xf32> to vector<4x16xf32>
    %234 = vector.shape_cast %233 : vector<4x16xf32> to vector<4x16x1xf32>
    %235 = vector.broadcast %234 : vector<4x16x1xf32> to vector<4x16x16xf32>
    %236 = arith.subf %232, %235 : vector<4x16x16xf32>
    %237 = math.exp %236 : vector<4x16x16xf32>
    %cst_93 = arith.constant dense<0.000000e+00> : vector<4x16xf32>
    %238 = vector.multi_reduction <add>, %237, %cst_93 [2] : vector<4x16x16xf32> to vector<4x16xf32>
    %239 = vector.shape_cast %238 : vector<4x16xf32> to vector<4x16x1xf32>
    %240 = tpu.reciprocal %239 {approx = true} : vector<4x16x1xf32> -> vector<4x16x1xf32>
    %241 = vector.broadcast %240 : vector<4x16x1xf32> to vector<4x16x16xf32>
    %242 = arith.mulf %237, %241 : vector<4x16x16xf32>
    "tpu.trace_start"() <{level = 10 : i32, message = "hqk,hkd->hqd"}> : () -> ()
    %cst_94 = arith.constant dense<0.000000e+00> : vector<4x16x8xf32>
    %243 = tpu.matmul %242, %227, %cst_94 {dimension_numbers = #tpu.dot_dimension_numbers<[2], [1], [1], [2], [0, 0, 0, 1, 1, 2], [0], [0]>} : vector<4x16x16xf32>, vector<4x16x8xf32>, vector<4x16x8xf32> -> vector<4x16x8xf32>
    "tpu.trace_stop"() : () -> ()
    %c1_95 = arith.constant 1 : index
    %c0_96 = arith.constant 0 : index
    %c0_97 = arith.constant 0 : index
    %c0_98 = arith.constant 0 : index
    %244 = vector.load %arg7[%c1_95, %c0_96, %c0_97, %c0_98] : memref<2x4x8x32xf32, #tpu.memory_space<vmem>>, vector<1x4x8x32xf32>
    %245 = vector.shape_cast %244 : vector<1x4x8x32xf32> to vector<4x8x32xf32>
    "tpu.trace_start"() <{level = 10 : i32, message = "hqd,hde->hqe"}> : () -> ()
    %cst_99 = arith.constant dense<0.000000e+00> : vector<4x16x32xf32>
    %246 = tpu.matmul %243, %245, %cst_99 {dimension_numbers = #tpu.dot_dimension_numbers<[2], [1], [1], [2], [0, 0, 0, 1, 1, 2], [0], [0]>} : vector<4x16x8xf32>, vector<4x8x32xf32>, vector<4x16x32xf32> -> vector<4x16x32xf32>
    "tpu.trace_stop"() : () -> ()
    %cst_100 = arith.constant dense<0.000000e+00> : vector<16x32xf32>
    %247 = vector.multi_reduction <add>, %246, %cst_100 [0] : vector<4x16x32xf32> to vector<16x32xf32>
    %c1_101 = arith.constant 1 : index
    %c0_102 = arith.constant 0 : index
    %c0_103 = arith.constant 0 : index
    %248 = vector.load %arg8[%c1_101, %c0_102, %c0_103] : memref<2x1x32xf32, #tpu.memory_space<vmem>>, vector<1x1x32xf32>
    %249 = vector.shape_cast %248 : vector<1x1x32xf32> to vector<1x32xf32>
    %250 = vector.broadcast %249 : vector<1x32xf32> to vector<16x32xf32>
    %251 = arith.addf %247, %250 : vector<16x32xf32>
    %252 = arith.addf %190, %251 : vector<16x32xf32>
    %c1_104 = arith.constant 1 : index
    %c0_105 = arith.constant 0 : index
    %c0_106 = arith.constant 0 : index
    %253 = vector.load %arg13[%c1_104, %c0_105, %c0_106] : memref<2x1x32xf32, #tpu.memory_space<vmem>>, vector<1x1x32xf32>
    %254 = vector.shape_cast %253 : vector<1x1x32xf32> to vector<1x32xf32>
    %c1_107 = arith.constant 1 : index
    %c0_108 = arith.constant 0 : index
    %c0_109 = arith.constant 0 : index
    %255 = vector.load %arg14[%c1_107, %c0_108, %c0_109] : memref<2x1x32xf32, #tpu.memory_space<vmem>>, vector<1x1x32xf32>
    %256 = vector.shape_cast %255 : vector<1x1x32xf32> to vector<1x32xf32>
    %cst_110 = arith.constant dense<0.000000e+00> : vector<16xf32>
    %257 = vector.multi_reduction <add>, %252, %cst_110 [1] : vector<16x32xf32> to vector<16xf32>
    %258 = vector.shape_cast %257 : vector<16xf32> to vector<16x1xf32>
    %cst_111 = arith.constant 3.200000e+01 : f32
    %259 = vector.broadcast %cst_111 : f32 to vector<16x1xf32>
    %260 = arith.divf %258, %259 : vector<16x1xf32>
    %261 = vector.broadcast %260 : vector<16x1xf32> to vector<16x32xf32>
    %262 = arith.subf %252, %261 : vector<16x32xf32>
    %263 = arith.mulf %262, %262 : vector<16x32xf32>
    %cst_112 = arith.constant dense<0.000000e+00> : vector<16xf32>
    %264 = vector.multi_reduction <add>, %263, %cst_112 [1] : vector<16x32xf32> to vector<16xf32>
    %265 = vector.shape_cast %264 : vector<16xf32> to vector<16x1xf32>
    %cst_113 = arith.constant 3.200000e+01 : f32
    %266 = vector.broadcast %cst_113 : f32 to vector<16x1xf32>
    %267 = arith.divf %265, %266 : vector<16x1xf32>
    %cst_114 = arith.constant 9.99999996E-13 : f32
    %268 = vector.broadcast %cst_114 : f32 to vector<16x1xf32>
    %269 = arith.addf %267, %268 : vector<16x1xf32>
    %270 = math.rsqrt %269 : vector<16x1xf32>
    %271 = vector.broadcast %270 : vector<16x1xf32> to vector<16x32xf32>
    %272 = arith.mulf %262, %271 : vector<16x32xf32>
    %273 = vector.broadcast %254 : vector<1x32xf32> to vector<16x32xf32>
    %274 = arith.mulf %272, %273 : vector<16x32xf32>
    %275 = vector.broadcast %256 : vector<1x32xf32> to vector<16x32xf32>
    %276 = arith.addf %274, %275 : vector<16x32xf32>
    %c1_115 = arith.constant 1 : index
    %c0_116 = arith.constant 0 : index
    %c0_117 = arith.constant 0 : index
    %277 = vector.load %arg9[%c1_115, %c0_116, %c0_117] : memref<2x32x64xf32, #tpu.memory_space<vmem>>, vector<1x32x64xf32>
    %278 = vector.shape_cast %277 : vector<1x32x64xf32> to vector<32x64xf32>
    %cst_118 = arith.constant dense<0.000000e+00> : vector<16x64xf32>
    %279 = tpu.matmul %276, %278, %cst_118 {dimension_numbers = #tpu.dot_dimension_numbers<[1], [0], [0], [1], [0, 0, 1, 1], [], []>} : vector<16x32xf32>, vector<32x64xf32>, vector<16x64xf32> -> vector<16x64xf32>
    %c1_119 = arith.constant 1 : index
    %c0_120 = arith.constant 0 : index
    %c0_121 = arith.constant 0 : index
    %280 = vector.load %arg10[%c1_119, %c0_120, %c0_121] : memref<2x1x64xf32, #tpu.memory_space<vmem>>, vector<1x1x64xf32>
    %281 = vector.shape_cast %280 : vector<1x1x64xf32> to vector<1x64xf32>
    %282 = vector.broadcast %281 : vector<1x64xf32> to vector<16x64xf32>
    %283 = arith.addf %279, %282 : vector<16x64xf32>
    %cst_122 = arith.constant 5.000000e-01 : f32
    %284 = vector.broadcast %cst_122 : f32 to vector<16x64xf32>
    %285 = arith.mulf %284, %283 : vector<16x64xf32>
    %cst_123 = arith.constant 0.707106769 : f32
    %286 = vector.broadcast %cst_123 : f32 to vector<16x64xf32>
    %287 = arith.mulf %283, %286 : vector<16x64xf32>
    %cst_124 = arith.constant 0.000000e+00 : f32
    %288 = vector.broadcast %cst_124 : f32 to vector<16x64xf32>
    %289 = arith.cmpf oge, %287, %288 : vector<16x64xf32>
    %cst_125 = arith.constant 1.000000e+00 : f32
    %cst_126 = arith.constant -1.000000e+00 : f32
    %290 = vector.broadcast %cst_125 : f32 to vector<16x64xf32>
    %291 = vector.broadcast %cst_126 : f32 to vector<16x64xf32>
    %292 = arith.select %289, %290, %291 : vector<16x64xi1>, vector<16x64xf32>
    %293 = math.absf %287 : vector<16x64xf32>
    %cst_127 = arith.constant 0.327591091 : f32
    %294 = vector.broadcast %cst_127 : f32 to vector<16x64xf32>
    %295 = arith.mulf %294, %293 : vector<16x64xf32>
    %cst_128 = arith.constant 1.000000e+00 : f32
    %296 = vector.broadcast %cst_128 : f32 to vector<16x64xf32>
    %297 = arith.addf %296, %295 : vector<16x64xf32>
    %cst_129 = arith.constant 1.000000e+00 : f32
    %298 = vector.broadcast %cst_129 : f32 to vector<16x64xf32>
    %299 = arith.divf %298, %297 : vector<16x64xf32>
    %cst_130 = arith.constant 1.06140542 : f32
    %300 = vector.broadcast %cst_130 : f32 to vector<16x64xf32>
    %301 = arith.mulf %300, %299 : vector<16x64xf32>
    %cst_131 = arith.constant -1.45315206 : f32
    %302 = vector.broadcast %cst_131 : f32 to vector<16x64xf32>
    %303 = arith.addf %301, %302 : vector<16x64xf32>
    %304 = arith.mulf %303, %299 : vector<16x64xf32>
    %cst_132 = arith.constant 1.42141378 : f32
    %305 = vector.broadcast %cst_132 : f32 to vector<16x64xf32>
    %306 = arith.addf %304, %305 : vector<16x64xf32>
    %307 = arith.mulf %306, %299 : vector<16x64xf32>
    %cst_133 = arith.constant -0.284496725 : f32
    %308 = vector.broadcast %cst_133 : f32 to vector<16x64xf32>
    %309 = arith.addf %307, %308 : vector<16x64xf32>
    %310 = arith.mulf %309, %299 : vector<16x64xf32>
    %cst_134 = arith.constant 0.254829586 : f32
    %311 = vector.broadcast %cst_134 : f32 to vector<16x64xf32>
    %312 = arith.addf %310, %311 : vector<16x64xf32>
    %313 = arith.mulf %312, %299 : vector<16x64xf32>
    %cst_135 = arith.constant 0.000000e+00 : f32
    %314 = vector.broadcast %cst_135 : f32 to vector<16x64xf32>
    %315 = arith.subf %314, %293 : vector<16x64xf32>
    %316 = arith.mulf %315, %293 : vector<16x64xf32>
    %317 = math.exp %316 : vector<16x64xf32>
    %318 = arith.mulf %313, %317 : vector<16x64xf32>
    %cst_136 = arith.constant 1.000000e+00 : f32
    %319 = vector.broadcast %cst_136 : f32 to vector<16x64xf32>
    %320 = arith.subf %319, %318 : vector<16x64xf32>
    %321 = arith.mulf %292, %320 : vector<16x64xf32>
    %cst_137 = arith.constant 1.000000e+00 : f32
    %322 = vector.broadcast %cst_137 : f32 to vector<16x64xf32>
    %323 = arith.addf %322, %321 : vector<16x64xf32>
    %324 = arith.mulf %285, %323 : vector<16x64xf32>
    %c1_138 = arith.constant 1 : index
    %c0_139 = arith.constant 0 : index
    %c0_140 = arith.constant 0 : index
    %325 = vector.load %arg11[%c1_138, %c0_139, %c0_140] : memref<2x64x32xf32, #tpu.memory_space<vmem>>, vector<1x64x32xf32>
    %326 = vector.shape_cast %325 : vector<1x64x32xf32> to vector<64x32xf32>
    %cst_141 = arith.constant dense<0.000000e+00> : vector<16x32xf32>
    %327 = tpu.matmul %324, %326, %cst_141 {dimension_numbers = #tpu.dot_dimension_numbers<[1], [0], [0], [1], [0, 0, 1, 1], [], []>} : vector<16x64xf32>, vector<64x32xf32>, vector<16x32xf32> -> vector<16x32xf32>
    %c1_142 = arith.constant 1 : index
    %c0_143 = arith.constant 0 : index
    %c0_144 = arith.constant 0 : index
    %328 = vector.load %arg12[%c1_142, %c0_143, %c0_144] : memref<2x1x32xf32, #tpu.memory_space<vmem>>, vector<1x1x32xf32>
    %329 = vector.shape_cast %328 : vector<1x1x32xf32> to vector<1x32xf32>
    %330 = vector.broadcast %329 : vector<1x32xf32> to vector<16x32xf32>
    %331 = arith.addf %327, %330 : vector<16x32xf32>
    %332 = arith.addf %276, %331 : vector<16x32xf32>
    %c1_145 = arith.constant 1 : index
    %c0_146 = arith.constant 0 : index
    %c0_147 = arith.constant 0 : index
    %333 = vector.load %arg15[%c1_145, %c0_146, %c0_147] : memref<2x1x32xf32, #tpu.memory_space<vmem>>, vector<1x1x32xf32>
    %334 = vector.shape_cast %333 : vector<1x1x32xf32> to vector<1x32xf32>
    %c1_148 = arith.constant 1 : index
    %c0_149 = arith.constant 0 : index
    %c0_150 = arith.constant 0 : index
    %335 = vector.load %arg16[%c1_148, %c0_149, %c0_150] : memref<2x1x32xf32, #tpu.memory_space<vmem>>, vector<1x1x32xf32>
    %336 = vector.shape_cast %335 : vector<1x1x32xf32> to vector<1x32xf32>
    %cst_151 = arith.constant dense<0.000000e+00> : vector<16xf32>
    %337 = vector.multi_reduction <add>, %332, %cst_151 [1] : vector<16x32xf32> to vector<16xf32>
    %338 = vector.shape_cast %337 : vector<16xf32> to vector<16x1xf32>
    %cst_152 = arith.constant 3.200000e+01 : f32
    %339 = vector.broadcast %cst_152 : f32 to vector<16x1xf32>
    %340 = arith.divf %338, %339 : vector<16x1xf32>
    %341 = vector.broadcast %340 : vector<16x1xf32> to vector<16x32xf32>
    %342 = arith.subf %332, %341 : vector<16x32xf32>
    %343 = arith.mulf %342, %342 : vector<16x32xf32>
    %cst_153 = arith.constant dense<0.000000e+00> : vector<16xf32>
    %344 = vector.multi_reduction <add>, %343, %cst_153 [1] : vector<16x32xf32> to vector<16xf32>
    %345 = vector.shape_cast %344 : vector<16xf32> to vector<16x1xf32>
    %cst_154 = arith.constant 3.200000e+01 : f32
    %346 = vector.broadcast %cst_154 : f32 to vector<16x1xf32>
    %347 = arith.divf %345, %346 : vector<16x1xf32>
    %cst_155 = arith.constant 9.99999996E-13 : f32
    %348 = vector.broadcast %cst_155 : f32 to vector<16x1xf32>
    %349 = arith.addf %347, %348 : vector<16x1xf32>
    %350 = math.rsqrt %349 : vector<16x1xf32>
    %351 = vector.broadcast %350 : vector<16x1xf32> to vector<16x32xf32>
    %352 = arith.mulf %342, %351 : vector<16x32xf32>
    %353 = vector.broadcast %334 : vector<1x32xf32> to vector<16x32xf32>
    %354 = arith.mulf %352, %353 : vector<16x32xf32>
    %355 = vector.broadcast %336 : vector<1x32xf32> to vector<16x32xf32>
    %356 = arith.addf %354, %355 : vector<16x32xf32>
    %c0_156 = arith.constant 0 : index
    %c0_157 = arith.constant 0 : index
    %357 = vector.load %arg2[%c0_156, %c0_157] : memref<2x16xf32, #tpu.memory_space<vmem>>, vector<2x16xf32>
    %cst_158 = arith.constant dense<0.000000e+00> : vector<2x32xf32>
    %358 = tpu.matmul %357, %356, %cst_158 {dimension_numbers = #tpu.dot_dimension_numbers<[1], [0], [0], [1], [0, 0, 1, 1], [], []>} : vector<2x16xf32>, vector<16x32xf32>, vector<2x32xf32> -> vector<2x32xf32>
    %cst_159 = arith.constant dense<0.000000e+00> : vector<2xf32>
    %359 = vector.multi_reduction <add>, %357, %cst_159 [1] : vector<2x16xf32> to vector<2xf32>
    %360 = vector.shape_cast %359 : vector<2xf32> to vector<2x1xf32>
    %cst_160 = arith.constant 9.99999971E-10 : f32
    %361 = vector.broadcast %cst_160 : f32 to vector<2x1xf32>
    %362 = arith.maximumf %360, %361 : vector<2x1xf32>
    %363 = tpu.reciprocal %362 {approx = true} : vector<2x1xf32> -> vector<2x1xf32>
    %364 = vector.broadcast %363 : vector<2x1xf32> to vector<2x32xf32>
    %365 = arith.mulf %358, %364 : vector<2x32xf32>
    %366 = arith.mulf %365, %365 : vector<2x32xf32>
    %cst_161 = arith.constant dense<0.000000e+00> : vector<2xf32>
    %367 = vector.multi_reduction <add>, %366, %cst_161 [1] : vector<2x32xf32> to vector<2xf32>
    %368 = vector.shape_cast %367 : vector<2xf32> to vector<2x1xf32>
    %369 = math.sqrt %368 : vector<2x1xf32>
    %cst_162 = arith.constant 9.99999996E-13 : f32
    %370 = vector.broadcast %cst_162 : f32 to vector<2x1xf32>
    %371 = arith.maximumf %369, %370 : vector<2x1xf32>
    %372 = vector.broadcast %371 : vector<2x1xf32> to vector<2x32xf32>
    %373 = arith.divf %365, %372 : vector<2x32xf32>
    %c0_163 = arith.constant 0 : index
    %c0_164 = arith.constant 0 : index
    %374 = vector.load %arg17[%c0_163, %c0_164] : memref<2x32xf32, #tpu.memory_space<vmem>>, vector<2x32xf32>
    tpu.vector_store %arg17[%c0_163, %c0_164], %373 {strides = array<i32>} : memref<2x32xf32, #tpu.memory_space<vmem>>, vector<2x32xf32>,
    return
  }
}

</mosaic_0001>

<llo_original>
// kernel: text_encoder_forward.1
$region0: #{text_encoder_forward.1}
  #allocation0 [shape = 'u32[]', space=smem, size = 0x4, offset = 0x4, fixed_abs, tag = 'smem constant byte address 0x4 - core index']
  #allocation1 [shape = 'u32[72,128]{1,0:T(1,128)}', space=vmem, size = 0x9000, scoped, tag = 'internal scratch']
  %s0 = inlined_call_operand.vmem [shape: f32[16,32], index: 0, kind: input, shape index: {}]
  %s1 = inlined_call_operand.vmem [shape: f32[16,16], index: 1, kind: input, shape index: {}]
  %s2 = inlined_call_operand.vmem [shape: f32[2,16], index: 2, kind: input, shape index: {}]
  %s3 = inlined_call_operand.vmem [shape: f32[1,32], index: 3, kind: input, shape index: {}]
  %s4 = inlined_call_operand.vmem [shape: f32[1,32], index: 4, kind: input, shape index: {}]
  %s5 = inlined_call_operand.vmem [shape: f32[2,32,96], index: 5, kind: input, shape index: {}]
  %s6 = inlined_call_operand.vmem [shape: f32[2,1,96], index: 6, kind: input, shape index: {}]
  %s7 = inlined_call_operand.vmem [shape: f32[2,4,8,32], index: 7, kind: input, shape index: {}]
  %s8 = inlined_call_operand.vmem [shape: f32[2,1,32], index: 8, kind: input, shape index: {}]
  %s9 = inlined_call_operand.vmem [shape: f32[2,32,64], index: 9, kind: input, shape index: {}]
  %s10 = inlined_call_operand.vmem [shape: f32[2,1,64], index: 10, kind: input, shape index: {}]
  %s11 = inlined_call_operand.vmem [shape: f32[2,64,32], index: 11, kind: input, shape index: {}]
  %s12 = inlined_call_operand.vmem [shape: f32[2,1,32], index: 12, kind: input, shape index: {}]
  %s13 = inlined_call_operand.vmem [shape: f32[2,1,32], index: 13, kind: input, shape index: {}]
  %s14 = inlined_call_operand.vmem [shape: f32[2,1,32], index: 14, kind: input, shape index: {}]
  %s15 = inlined_call_operand.vmem [shape: f32[2,1,32], index: 15, kind: input, shape index: {}]
  %s16 = inlined_call_operand.vmem [shape: f32[2,1,32], index: 16, kind: input, shape index: {}]
  %s17 = inlined_call_operand.hbm [shape: f32[2,32], index: 17, kind: output, shape index: {}]
  %s18 = sld [smem:[#allocation0]]
  $region78: #{text_encoder_forward.1} parent=0
    _
  %s20 = ssub.s32 1, %s18
  %s21 = scalar_select 0, %s20, %s18
  $region1: #{text_encoder_forward.1} parent=0
    #allocation2 [shape = 'u8[1024]{0}', space=vmem, size = 0x400, scoped, tag = 'output window, operand 0, single buffered']
    #allocation3 [shape = 's32[1]{0}', space=sflag, size = 0x4, scoped, tag = 'scoped memory for text_encoder_forward.1']
    %22 = vsyncpa [#allocation3], 0
    // Predicated region
    $region2: #{text_encoder_forward.1} parent=1 // pred_check
      _
    $region3: #{text_encoder_forward.1} parent=1 // pred_check_branch
      %24 = sbr.rel (0) target = $region5
    $region4: #{text_encoder_forward.1} parent=1 // pred_region
      _
    $region5: #{text_encoder_forward.1} parent=1 // pred_fallthru
      _
    // Predicated region
    $region6: #{text_encoder_forward.1} parent=1 // pred_check
      _
    $region7: #{text_encoder_forward.1} parent=1 // pred_check_branch
      %26 = sbr.rel (0) target = $region9
    $region8: #{text_encoder_forward.1} parent=1 // pred_region
      _
    $region9: #{text_encoder_forward.1} parent=1 // pred_fallthru
      _
    // Predicated region
    $region10: #{text_encoder_forward.1} parent=1 // pred_check
      _
    $region11: #{text_encoder_forward.1} parent=1 // pred_check_branch
      %28 = sbr.rel (0) target = $region13
    $region12: #{text_encoder_forward.1} parent=1 // pred_region
      _
    $region13: #{text_encoder_forward.1} parent=1 // pred_fallthru
      _
    // Predicated region
    $region14: #{text_encoder_forward.1} parent=1 // pred_check
      _
    $region15: #{text_encoder_forward.1} parent=1 // pred_check_branch
      %30 = sbr.rel (0) target = $region17
    $region16: #{text_encoder_forward.1} parent=1 // pred_region
      _
    $region17: #{text_encoder_forward.1} parent=1 // pred_fallthru
      _
    // Predicated region
    $region18: #{text_encoder_forward.1} parent=1 // pred_check
      _
    $region19: #{text_encoder_forward.1} parent=1 // pred_check_branch
      %32 = sbr.rel (0) target = $region21
    $region20: #{text_encoder_forward.1} parent=1 // pred_region
      _
    $region21: #{text_encoder_forward.1} parent=1 // pred_fallthru
      _
    // Predicated region
    $region22: #{text_encoder_forward.1} parent=1 // pred_check
      _
    $region23: #{text_encoder_forward.1} parent=1 // pred_check_branch
      %34 = sbr.rel (0) target = $region25
    $region24: #{text_encoder_forward.1} parent=1 // pred_region
      _
    $region25: #{text_encoder_forward.1} parent=1 // pred_fallthru
      _
    // Predicated region
    $region26: #{text_encoder_forward.1} parent=1 // pred_check
      _
    $region27: #{text_encoder_forward.1} parent=1 // pred_check_branch
      %36 = sbr.rel (0) target = $region29
    $region28: #{text_encoder_forward.1} parent=1 // pred_region
      _
    $region29: #{text_encoder_forward.1} parent=1 // pred_fallthru
      _
    // Predicated region
    $region30: #{text_encoder_forward.1} parent=1 // pred_check
      _
    $region31: #{text_encoder_forward.1} parent=1 // pred_check_branch
      %38 = sbr.rel (0) target = $region33
    $region32: #{text_encoder_forward.1} parent=1 // pred_region
      _
    $region33: #{text_encoder_forward.1} parent=1 // pred_fallthru
      _
    // Predicated region
    $region34: #{text_encoder_forward.1} parent=1 // pred_check
      _
    $region35: #{text_encoder_forward.1} parent=1 // pred_check_branch
      %40 = sbr.rel (0) target = $region37
    $region36: #{text_encoder_forward.1} parent=1 // pred_region
      _
    $region37: #{text_encoder_forward.1} parent=1 // pred_fallthru
      _
    // Predicated region
    $region38: #{text_encoder_forward.1} parent=1 // pred_check
      _
    $region39: #{text_encoder_forward.1} parent=1 // pred_check_branch
      %42 = sbr.rel (0) target = $region41
    $region40: #{text_encoder_forward.1} parent=1 // pred_region
      _
    $region41: #{text_encoder_forward.1} parent=1 // pred_fallthru
      _
    // Predicated region
    $region42: #{text_encoder_forward.1} parent=1 // pred_check
      _
    $region43: #{text_encoder_forward.1} parent=1 // pred_check_branch
      %44 = sbr.rel (0) target = $region45
    $region44: #{text_encoder_forward.1} parent=1 // pred_region
      _
    $region45: #{text_encoder_forward.1} parent=1 // pred_fallthru
      _
    // Predicated region
    $region46: #{text_encoder_forward.1} parent=1 // pred_check
      _
    $region47: #{text_encoder_forward.1} parent=1 // pred_check_branch
      %46 = sbr.rel (0) target = $region49
    $region48: #{text_encoder_forward.1} parent=1 // pred_region
      _
    $region49: #{text_encoder_forward.1} parent=1 // pred_fallthru
      _
    // Predicated region
    $region50: #{text_encoder_forward.1} parent=1 // pred_check
      _
    $region51: #{text_encoder_forward.1} parent=1 // pred_check_branch
      %48 = sbr.rel (0) target = $region53
    $region52: #{text_encoder_forward.1} parent=1 // pred_region
      _
    $region53: #{text_encoder_forward.1} parent=1 // pred_fallthru
      _
    // Predicated region
    $region54: #{text_encoder_forward.1} parent=1 // pred_check
      _
    $region55: #{text_encoder_forward.1} parent=1 // pred_check_branch
      %50 = sbr.rel (0) target = $region57
    $region56: #{text_encoder_forward.1} parent=1 // pred_region
      _
    $region57: #{text_encoder_forward.1} parent=1 // pred_fallthru
      _
    // Predicated region
    $region58: #{text_encoder_forward.1} parent=1 // pred_check
      _
    $region59: #{text_encoder_forward.1} parent=1 // pred_check_branch
      %52 = sbr.rel (0) target = $region61
    $region60: #{text_encoder_forward.1} parent=1 // pred_region
      _
    $region61: #{text_encoder_forward.1} parent=1 // pred_fallthru
      _
    // Predicated region
    $region62: #{text_encoder_forward.1} parent=1 // pred_check
      _
    $region63: #{text_encoder_forward.1} parent=1 // pred_check_branch
      %54 = sbr.rel (0) target = $region65
    $region64: #{text_encoder_forward.1} parent=1 // pred_region
      _
    $region65: #{text_encoder_forward.1} parent=1 // pred_fallthru
      _
    // Predicated region
    $region66: #{text_encoder_forward.1} parent=1 // pred_check
      _
    $region67: #{text_encoder_forward.1} parent=1 // pred_check_branch
      %56 = sbr.rel (0) target = $region69
    $region68: #{text_encoder_forward.1} parent=1 // pred_region
      _
    $region69: #{text_encoder_forward.1} parent=1 // pred_fallthru
      _
    %v57 = vld [vmem:[%s0] sm:$0xff]
    %v58 = vld [vmem:[%s0 + $0x8] sm:$0xff]
    %v59 = vld [vmem:[%s3] sm:$0x1]
    %v60 = vld [vmem:[%s4] sm:$0x1]
    %vm61 = vcmask 261120
    %v62 = vsel %vm61, %v57, 0.0
    %63 = vadd.xlane.f32.xlu0 %v62
    %v64 = vpop.xlane.xlu0 %63
    %v65 = vsel %vm61, %v58, 0.0
    %66 = vadd.xlane.f32.xlu0 %v65
    %v67 = vpop.xlane.xlu0 %66
    %v68 = vrcp.pop 32.0
    %v69 = vmul.f32 32.0, %v68
    %v70 = vsub.f32 1.0, %v69
    %v71 = vmul.f32 %v68, %v70
    %v72 = vadd.f32 %v68, %v71
    %vm73 = vweird.f32 %v68
    %v74 = vsel %vm73, %v68, %v72
    %v75 = vmul.f32 %v64, %v74
    %v76 = vmul.f32 %v67, %v74
    %v77 = vsub.f32 %v57, %v75
    %v78 = vsub.f32 %v58, %v76
    %v79 = vmul.f32 %v77, %v77
    %v80 = vmul.f32 %v78, %v78
    %v81 = vsel %vm61, %v79, 0.0
    %82 = vadd.xlane.f32.xlu0 %v81
    %v83 = vpop.xlane.xlu0 %82
    %v84 = vsel %vm61, %v80, 0.0
    %85 = vadd.xlane.f32.xlu0 %v84
    %v86 = vpop.xlane.xlu0 %85
    %v87 = vmul.f32 %v83, %v74
    %v88 = vmul.f32 %v86, %v74
    %v89 = vadd.f32 %v87, 1e-12
    %v90 = vadd.f32 %v88, 1e-12
    %v91 = vrsqrt.pop %v89
    %v92 = vmul.f32 %v91, %v89
    %v93 = vmul.f32 %v92, %v91
    %v94 = vmul.f32 0.5, %v93
    %v95 = vsub.f32 1.5, %v94
    %v96 = vmul.f32 %v91, %v95
    %vm97 = vweird.f32 %v89
    %vm98 = vweird.f32 %v91
    %vm99 = vmor %vm97, %vm98
    %v100 = vsel %vm99, %v91, %v96
    %v101 = vrsqrt.pop %v90
    %v102 = vmul.f32 %v101, %v90
    %v103 = vmul.f32 %v102, %v101
    %v104 = vmul.f32 0.5, %v103
    %v105 = vsub.f32 1.5, %v104
    %v106 = vmul.f32 %v101, %v105
    %vm107 = vweird.f32 %v90
    %vm108 = vweird.f32 %v101
    %vm109 = vmor %vm107, %vm108
    %v110 = vsel %vm109, %v101, %v106
    %v111 = vmul.f32 %v77, %v100
    %v112 = vmul.f32 %v78, %v110
    %v114 = vperm.slane %v59, 0
    %v116 = vmul.f32 %v111, %v114
    %v117 = vmul.f32 %v112, %v114
    %v119 = vperm.slane %v60, 0
    %v121 = vadd.f32 %v116, %v119
    %v122 = vadd.f32 %v117, %v119
    %v123 = vld [vmem:[%s1] sm:$0xff]
    %v124 = vld [vmem:[%s1 + $0x8] sm:$0xff]
    %v125 = vld [vmem:[%s5] sm:$0xff]
    %v126 = vld [vmem:[%s5 + $0x8] sm:$0xff]
    %v127 = vld [vmem:[%s5 + $0x10] sm:$0xff]
    %v128 = vld [vmem:[%s5 + $0x18] sm:$0xff]
    %v129 = vld [vmem:[%s6] sm:$0x1]
    %v131 = vperm.slane %v129, 0
    %v134 = vsel %vm61, %v121, 0
    %v137 = vsel %vm61, %v122, 0
    %139 = vmatpush.msra.mxu0 0.0
    %140 = vmatpush.msra.mxu0 0.0
    %141 = vmatpush.msra.mxu0 0.0
    %142 = vmatpush.msra.mxu0 0.0
    %143 = vmatpush.msra.mxu0 0.0
    %144 = vmatpush.msra.mxu0 0.0
    %145 = vmatpush.msra.mxu0 0.0
    %146 = vmatpush.msra.mxu0 0.0
    %147 = vmatpush.msra.mxu0 0.0
    %148 = vmatpush.msra.mxu0 0.0
    %149 = vmatpush.msra.mxu0 0.0
    %150 = vmatpush.msra.mxu0 0.0
    %151 = vmatpush.msra.mxu0 %v128
    %152 = vmatpush.msra.mxu0 %v127
    %153 = vmatpush.msra.mxu0 %v126
    %154 = vmatpush.msra.mxu0 %v125
    %155 = vmatmul.f32.gmra.mxu0 %v134
    %v156 = vpop.f32.mrf.mxu0
    %v157 = vadd.f32 %v131, %v156
    %158 = vmatmul.f32.gmra.mxu0 %v137
    %v159 = vpop.f32.mrf.mxu0
    %v160 = vadd.f32 %v131, %v159
    %161 = vdwg.mxu0
    %164 = vrot.lane.b32.xlu0 %v157, 120
    %v165 = vpop.permute.xlu0 %164
    %166 = vrot.lane.b32.xlu0 %v160, 120
    %v167 = vpop.permute.xlu0 %166
    %168 = vrot.lane.b32.xlu0 %v157, 112
    %v169 = vpop.permute.xlu0 %168
    %170 = vrot.lane.b32.xlu0 %v160, 112
    %v171 = vpop.permute.xlu0 %170
    %172 = vrot.lane.b32.xlu0 %v157, 104
    %v173 = vpop.permute.xlu0 %172
    %174 = vrot.lane.b32.xlu0 %v160, 104
    %v175 = vpop.permute.xlu0 %174
    %176 = vrot.lane.b32.xlu0 %v157, 96
    %v177 = vpop.permute.xlu0 %176
    %178 = vrot.lane.b32.xlu0 %v160, 96
    %v179 = vpop.permute.xlu0 %178
    %vm180 = vcmask 64512
    %v181 = vsel %vm180, %v157, 0
    %v183 = vsel %vm180, %v160, 0
    %v185 = vsel %vm180, %v177, 0
    %v187 = vsel %vm180, %v179, 0
    %189 = vmatpush.xpose.msra.mxu0 0.0
    %190 = vmatpush.xpose.msra.mxu0 0.0
    %191 = vmatpush.xpose.msra.mxu0 0.0
    %192 = vmatpush.xpose.msra.mxu0 0.0
    %193 = vmatpush.xpose.msra.mxu0 0.0
    %194 = vmatpush.xpose.msra.mxu0 0.0
    %195 = vmatpush.xpose.msra.mxu0 0.0
    %196 = vmatpush.xpose.msra.mxu0 0.0
    %197 = vmatpush.xpose.msra.mxu0 0.0
    %198 = vmatpush.xpose.msra.mxu0 0.0
    %199 = vmatpush.xpose.msra.mxu0 0.0
    %200 = vmatpush.xpose.msra.mxu0 0.0
    %201 = vmatpush.xpose.msra.mxu0 0.0
    %202 = vmatpush.xpose.msra.mxu0 0.0
    %203 = vmatpush.xpose.msra.mxu0 %v187
    %204 = vmatpush.xpose.msra.mxu0 %v185
    %205 = vmatmul.f32.gmra.mxu0 %v181
    %v206 = vpop.f32.mrf.mxu0
    %v207 = vadd.f32 0.0, %v206
    %208 = vmatmul.f32.gmra.mxu0 %v183
    %v209 = vpop.f32.mrf.mxu0
    %v210 = vadd.f32 0.0, %v209
    %211 = vdwg.mxu0
    %212 = vrot.lane.b32.xlu0 %v165, 96
    %v213 = vpop.permute.xlu0 %212
    %214 = vrot.lane.b32.xlu0 %v167, 96
    %v215 = vpop.permute.xlu0 %214
    %v216 = vsel %vm180, %v165, 0
    %v218 = vsel %vm180, %v167, 0
    %v220 = vsel %vm180, %v213, 0
    %v222 = vsel %vm180, %v215, 0
    %224 = vmatpush.xpose.msra.mxu0 0.0
    %225 = vmatpush.xpose.msra.mxu0 0.0
    %226 = vmatpush.xpose.msra.mxu0 0.0
    %227 = vmatpush.xpose.msra.mxu0 0.0
    %228 = vmatpush.xpose.msra.mxu0 0.0
    %229 = vmatpush.xpose.msra.mxu0 0.0
    %230 = vmatpush.xpose.msra.mxu0 0.0
    %231 = vmatpush.xpose.msra.mxu0 0.0
    %232 = vmatpush.xpose.msra.mxu0 0.0
    %233 = vmatpush.xpose.msra.mxu0 0.0
    %234 = vmatpush.xpose.msra.mxu0 0.0
    %235 = vmatpush.xpose.msra.mxu0 0.0
    %236 = vmatpush.xpose.msra.mxu0 0.0
    %237 = vmatpush.xpose.msra.mxu0 0.0
    %238 = vmatpush.xpose.msra.mxu0 %v222
    %239 = vmatpush.xpose.msra.mxu0 %v220
    %240 = vmatmul.f32.gmra.mxu0 %v216
    %v241 = vpop.f32.mrf.mxu0
    %v242 = vadd.f32 0.0, %v241
    %243 = vmatmul.f32.gmra.mxu0 %v218
    %v244 = vpop.f32.mrf.mxu0
    %v245 = vadd.f32 0.0, %v244
    %246 = vdwg.mxu0
    %247 = vrot.lane.b32.xlu0 %v169, 96
    %v248 = vpop.permute.xlu0 %247
    %249 = vrot.lane.b32.xlu0 %v171, 96
    %v250 = vpop.permute.xlu0 %249
    %v251 = vsel %vm180, %v169, 0
    %v253 = vsel %vm180, %v171, 0
    %v255 = vsel %vm180, %v248, 0
    %v257 = vsel %vm180, %v250, 0
    %259 = vmatpush.xpose.msra.mxu0 0.0
    %260 = vmatpush.xpose.msra.mxu0 0.0
    %261 = vmatpush.xpose.msra.mxu0 0.0
    %262 = vmatpush.xpose.msra.mxu0 0.0
    %263 = vmatpush.xpose.msra.mxu0 0.0
    %264 = vmatpush.xpose.msra.mxu0 0.0
    %265 = vmatpush.xpose.msra.mxu0 0.0
    %266 = vmatpush.xpose.msra.mxu0 0.0
    %267 = vmatpush.xpose.msra.mxu0 0.0
    %268 = vmatpush.xpose.msra.mxu0 0.0
    %269 = vmatpush.xpose.msra.mxu0 0.0
    %270 = vmatpush.xpose.msra.mxu0 0.0
    %271 = vmatpush.xpose.msra.mxu0 0.0
    %272 = vmatpush.xpose.msra.mxu0 0.0
    %273 = vmatpush.xpose.msra.mxu0 %v257
    %274 = vmatpush.xpose.msra.mxu0 %v255
    %275 = vmatmul.f32.gmra.mxu0 %v251
    %v276 = vpop.f32.mrf.mxu0
    %v277 = vadd.f32 0.0, %v276
    %278 = vmatmul.f32.gmra.mxu0 %v253
    %v279 = vpop.f32.mrf.mxu0
    %v280 = vadd.f32 0.0, %v279
    %281 = vdwg.mxu0
    %282 = vrot.lane.b32.xlu0 %v173, 96
    %v283 = vpop.permute.xlu0 %282
    %284 = vrot.lane.b32.xlu0 %v175, 96
    %v285 = vpop.permute.xlu0 %284
    %v286 = vsel %vm180, %v173, 0
    %v288 = vsel %vm180, %v175, 0
    %v290 = vsel %vm180, %v283, 0
    %v292 = vsel %vm180, %v285, 0
    %294 = vmatpush.xpose.msra.mxu0 0.0
    %295 = vmatpush.xpose.msra.mxu0 0.0
    %296 = vmatpush.xpose.msra.mxu0 0.0
    %297 = vmatpush.xpose.msra.mxu0 0.0
    %298 = vmatpush.xpose.msra.mxu0 0.0
    %299 = vmatpush.xpose.msra.mxu0 0.0
    %300 = vmatpush.xpose.msra.mxu0 0.0
    %301 = vmatpush.xpose.msra.mxu0 0.0
    %302 = vmatpush.xpose.msra.mxu0 0.0
    %303 = vmatpush.xpose.msra.mxu0 0.0
    %304 = vmatpush.xpose.msra.mxu0 0.0
    %305 = vmatpush.xpose.msra.mxu0 0.0
    %306 = vmatpush.xpose.msra.mxu0 0.0
    %307 = vmatpush.xpose.msra.mxu0 0.0
    %308 = vmatpush.xpose.msra.mxu0 %v292
    %309 = vmatpush.xpose.msra.mxu0 %v290
    %310 = vmatmul.f32.gmra.mxu0 %v286
    %v311 = vpop.f32.mrf.mxu0
    %v312 = vadd.f32 0.0, %v311
    %313 = vmatmul.f32.gmra.mxu0 %v288
    %v314 = vpop.f32.mrf.mxu0
    %v315 = vadd.f32 0.0, %v314
    %316 = vdwg.mxu0
    %v317 = vmul.f32 %v207, 0.35355338
    %v318 = vmul.f32 %v210, 0.35355338
    %v319 = vmul.f32 %v242, 0.35355338
    %v320 = vmul.f32 %v245, 0.35355338
    %v321 = vmul.f32 %v277, 0.35355338
    %v322 = vmul.f32 %v280, 0.35355338
    %v323 = vmul.f32 %v312, 0.35355338
    %v324 = vmul.f32 %v315, 0.35355338
    %v325 = vadd.f32 %v317, %v123
    %v326 = vadd.f32 %v318, %v124
    %v327 = vadd.f32 %v319, %v123
    %v328 = vadd.f32 %v320, %v124
    %v329 = vadd.f32 %v321, %v123
    %v330 = vadd.f32 %v322, %v124
    %v331 = vadd.f32 %v323, %v123
    %v332 = vadd.f32 %v324, %v124
    %vm333 = vcmask 130048
    %v334 = vsel %vm333, %v325, -inf
    %335 = vmax.xlane.f32.xlu0 %v334
    %v336 = vpop.xlane.xlu0 %335
    %v337 = vsel %vm333, %v326, -inf
    %338 = vmax.xlane.f32.xlu0 %v337
    %v339 = vpop.xlane.xlu0 %338
    %v340 = vsel %vm333, %v327, -inf
    %341 = vmax.xlane.f32.xlu0 %v340
    %v342 = vpop.xlane.xlu0 %341
    %v343 = vsel %vm333, %v328, -inf
    %344 = vmax.xlane.f32.xlu0 %v343
    %v345 = vpop.xlane.xlu0 %344
    %v346 = vsel %vm333, %v329, -inf
    %347 = vmax.xlane.f32.xlu0 %v346
    %v348 = vpop.xlane.xlu0 %347
    %v349 = vsel %vm333, %v330, -inf
    %350 = vmax.xlane.f32.xlu0 %v349
    %v351 = vpop.xlane.xlu0 %350
    %v352 = vsel %vm333, %v331, -inf
    %353 = vmax.xlane.f32.xlu0 %v352
    %v354 = vpop.xlane.xlu0 %353
    %v355 = vsel %vm333, %v332, -inf
    %356 = vmax.xlane.f32.xlu0 %v355
    %v357 = vpop.xlane.xlu0 %356
    %v358 = vsub.f32 %v325, %v336
    %v359 = vsub.f32 %v326, %v339
    %v360 = vsub.f32 %v327, %v342
    %v361 = vsub.f32 %v328, %v345
    %v362 = vsub.f32 %v329, %v348
    %v363 = vsub.f32 %v330, %v351
    %v364 = vsub.f32 %v331, %v354
    %v365 = vsub.f32 %v332, %v357
    %v366 = vmul.f32 %v358, 1.442695
    %v367 = vpow.pop %v366
    %v368 = vmul.f32 %v359, 1.442695
    %v369 = vpow.pop %v368
    %v370 = vmul.f32 %v360, 1.442695
    %v371 = vpow.pop %v370
    %v372 = vmul.f32 %v361, 1.442695
    %v373 = vpow.pop %v372
    %v374 = vmul.f32 %v362, 1.442695
    %v375 = vpow.pop %v374
    %v376 = vmul.f32 %v363, 1.442695
    %v377 = vpow.pop %v376
    %v378 = vmul.f32 %v364, 1.442695
    %v379 = vpow.pop %v378
    %v380 = vmul.f32 %v365, 1.442695
    %v381 = vpow.pop %v380
    %v382 = vsel %vm333, %v367, 0.0
    %383 = vadd.xlane.f32.xlu0 %v382
    %v384 = vpop.xlane.xlu0 %383
    %v385 = vsel %vm333, %v369, 0.0
    %386 = vadd.xlane.f32.xlu0 %v385
    %v387 = vpop.xlane.xlu0 %386
    %v388 = vsel %vm333, %v371, 0.0
    %389 = vadd.xlane.f32.xlu0 %v388
    %v390 = vpop.xlane.xlu0 %389
    %v391 = vsel %vm333, %v373, 0.0
    %392 = vadd.xlane.f32.xlu0 %v391
    %v393 = vpop.xlane.xlu0 %392
    %v394 = vsel %vm333, %v375, 0.0
    %395 = vadd.xlane.f32.xlu0 %v394
    %v396 = vpop.xlane.xlu0 %395
    %v397 = vsel %vm333, %v377, 0.0
    %398 = vadd.xlane.f32.xlu0 %v397
    %v399 = vpop.xlane.xlu0 %398
    %v400 = vsel %vm333, %v379, 0.0
    %401 = vadd.xlane.f32.xlu0 %v400
    %v402 = vpop.xlane.xlu0 %401
    %v403 = vsel %vm333, %v381, 0.0
    %404 = vadd.xlane.f32.xlu0 %v403
    %v405 = vpop.xlane.xlu0 %404
    %v406 = vrcp.pop %v384
    %v407 = vrcp.pop %v387
    %v408 = vrcp.pop %v390
    %v409 = vrcp.pop %v393
    %v410 = vrcp.pop %v396
    %v411 = vrcp.pop %v399
    %v412 = vrcp.pop %v402
    %v413 = vrcp.pop %v405
    %v414 = vmul.f32 %v367, %v406
    %v415 = vmul.f32 %v369, %v407
    %v416 = vmul.f32 %v371, %v408
    %v417 = vmul.f32 %v373, %v409
    %v418 = vmul.f32 %v375, %v410
    %v419 = vmul.f32 %v377, %v411
    %v420 = vmul.f32 %v379, %v412
    %v421 = vmul.f32 %v381, %v413
    %422 = vrot.lane.b32.xlu0 %v157, 64
    %v423 = vpop.permute.xlu0 %422
    %424 = vrot.lane.b32.xlu0 %v160, 64
    %v425 = vpop.permute.xlu0 %424
    %v429 = vsel %vm333, %v414, 0
    %v432 = vsel %vm333, %v415, 0
    %434 = vmatpush.msra.mxu0 0.0
    %435 = vmatpush.msra.mxu0 0.0
    %436 = vmatpush.msra.mxu0 0.0
    %437 = vmatpush.msra.mxu0 0.0
    %438 = vmatpush.msra.mxu0 0.0
    %439 = vmatpush.msra.mxu0 0.0
    %440 = vmatpush.msra.mxu0 0.0
    %441 = vmatpush.msra.mxu0 0.0
    %442 = vmatpush.msra.mxu0 0.0
    %443 = vmatpush.msra.mxu0 0.0
    %444 = vmatpush.msra.mxu0 0.0
    %445 = vmatpush.msra.mxu0 0.0
    %446 = vmatpush.msra.mxu0 0.0
    %447 = vmatpush.msra.mxu0 0.0
    %448 = vmatpush.msra.mxu0 %v425
    %449 = vmatpush.msra.mxu0 %v423
    %450 = vmatmul.f32.gmra.mxu0 %v429
    %v451 = vpop.f32.mrf.mxu0
    %v452 = vadd.f32 0.0, %v451
    %453 = vmatmul.f32.gmra.mxu0 %v432
    %v454 = vpop.f32.mrf.mxu0
    %v455 = vadd.f32 0.0, %v454
    %456 = vdwg.mxu0
    %457 = vrot.lane.b32.xlu0 %v165, 64
    %v458 = vpop.permute.xlu0 %457
    %459 = vrot.lane.b32.xlu0 %v167, 64
    %v460 = vpop.permute.xlu0 %459
    %v464 = vsel %vm333, %v416, 0
    %v467 = vsel %vm333, %v417, 0
    %469 = vmatpush.msra.mxu0 0.0
    %470 = vmatpush.msra.mxu0 0.0
    %471 = vmatpush.msra.mxu0 0.0
    %472 = vmatpush.msra.mxu0 0.0
    %473 = vmatpush.msra.mxu0 0.0
    %474 = vmatpush.msra.mxu0 0.0
    %475 = vmatpush.msra.mxu0 0.0
    %476 = vmatpush.msra.mxu0 0.0
    %477 = vmatpush.msra.mxu0 0.0
    %478 = vmatpush.msra.mxu0 0.0
    %479 = vmatpush.msra.mxu0 0.0
    %480 = vmatpush.msra.mxu0 0.0
    %481 = vmatpush.msra.mxu0 0.0
    %482 = vmatpush.msra.mxu0 0.0
    %483 = vmatpush.msra.mxu0 %v460
    %484 = vmatpush.msra.mxu0 %v458
    %485 = vmatmul.f32.gmra.mxu0 %v464
    %v486 = vpop.f32.mrf.mxu0
    %v487 = vadd.f32 0.0, %v486
    %488 = vmatmul.f32.gmra.mxu0 %v467
    %v489 = vpop.f32.mrf.mxu0
    %v490 = vadd.f32 0.0, %v489
    %491 = vdwg.mxu0
    %492 = vrot.lane.b32.xlu0 %v169, 64
    %v493 = vpop.permute.xlu0 %492
    %494 = vrot.lane.b32.xlu0 %v171, 64
    %v495 = vpop.permute.xlu0 %494
    %v499 = vsel %vm333, %v418, 0
    %v502 = vsel %vm333, %v419, 0
    %504 = vmatpush.msra.mxu0 0.0
    %505 = vmatpush.msra.mxu0 0.0
    %506 = vmatpush.msra.mxu0 0.0
    %507 = vmatpush.msra.mxu0 0.0
    %508 = vmatpush.msra.mxu0 0.0
    %509 = vmatpush.msra.mxu0 0.0
    %510 = vmatpush.msra.mxu0 0.0
    %511 = vmatpush.msra.mxu0 0.0
    %512 = vmatpush.msra.mxu0 0.0
    %513 = vmatpush.msra.mxu0 0.0
    %514 = vmatpush.msra.mxu0 0.0
    %515 = vmatpush.msra.mxu0 0.0
    %516 = vmatpush.msra.mxu0 0.0
    %517 = vmatpush.msra.mxu0 0.0
    %518 = vmatpush.msra.mxu0 %v495
    %519 = vmatpush.msra.mxu0 %v493
    %520 = vmatmul.f32.gmra.mxu0 %v499
    %v521 = vpop.f32.mrf.mxu0
    %v522 = vadd.f32 0.0, %v521
    %523 = vmatmul.f32.gmra.mxu0 %v502
    %v524 = vpop.f32.mrf.mxu0
    %v525 = vadd.f32 0.0, %v524
    %526 = vdwg.mxu0
    %527 = vrot.lane.b32.xlu0 %v173, 64
    %v528 = vpop.permute.xlu0 %527
    %529 = vrot.lane.b32.xlu0 %v175, 64
    %v530 = vpop.permute.xlu0 %529
    %v534 = vsel %vm333, %v420, 0
    %v537 = vsel %vm333, %v421, 0
    %539 = vmatpush.msra.mxu0 0.0
    %540 = vmatpush.msra.mxu0 0.0
    %541 = vmatpush.msra.mxu0 0.0
    %542 = vmatpush.msra.mxu0 0.0
    %543 = vmatpush.msra.mxu0 0.0
    %544 = vmatpush.msra.mxu0 0.0
    %545 = vmatpush.msra.mxu0 0.0
    %546 = vmatpush.msra.mxu0 0.0
    %547 = vmatpush.msra.mxu0 0.0
    %548 = vmatpush.msra.mxu0 0.0
    %549 = vmatpush.msra.mxu0 0.0
    %550 = vmatpush.msra.mxu0 0.0
    %551 = vmatpush.msra.mxu0 0.0
    %552 = vmatpush.msra.mxu0 0.0
    %553 = vmatpush.msra.mxu0 %v530
    %554 = vmatpush.msra.mxu0 %v528
    %555 = vmatmul.f32.gmra.mxu0 %v534
    %v556 = vpop.f32.mrf.mxu0
    %v557 = vadd.f32 0.0, %v556
    %558 = vmatmul.f32.gmra.mxu0 %v537
    %v559 = vpop.f32.mrf.mxu0
    %v560 = vadd.f32 0.0, %v559
    %561 = vdwg.mxu0
    %v562 = vld [vmem:[%s7] sm:$0xff]
    %v563 = vld [vmem:[%s7 + $0x8] sm:$0xff]
    %v564 = vld [vmem:[%s7 + $0x10] sm:$0xff]
    %v565 = vld [vmem:[%s7 + $0x18] sm:$0xff]
    %v567 = vsel %vm180, %v452, 0
    %v570 = vsel %vm180, %v455, 0
    %572 = vmatpush.msra.mxu0 0.0
    %573 = vmatpush.msra.mxu0 0.0
    %574 = vmatpush.msra.mxu0 0.0
    %575 = vmatpush.msra.mxu0 0.0
    %576 = vmatpush.msra.mxu0 0.0
    %577 = vmatpush.msra.mxu0 0.0
    %578 = vmatpush.msra.mxu0 0.0
    %579 = vmatpush.msra.mxu0 0.0
    %580 = vmatpush.msra.mxu0 0.0
    %581 = vmatpush.msra.mxu0 0.0
    %582 = vmatpush.msra.mxu0 0.0
    %583 = vmatpush.msra.mxu0 0.0
    %584 = vmatpush.msra.mxu0 0.0
    %585 = vmatpush.msra.mxu0 0.0
    %586 = vmatpush.msra.mxu0 0.0
    %587 = vmatpush.msra.mxu0 %v562
    %588 = vmatmul.f32.gmra.mxu0 %v567
    %v589 = vpop.f32.mrf.mxu0
    %v590 = vadd.f32 0.0, %v589
    %591 = vmatmul.f32.gmra.mxu0 %v570
    %v592 = vpop.f32.mrf.mxu0
    %v593 = vadd.f32 0.0, %v592
    %594 = vdwg.mxu0
    %v596 = vsel %vm180, %v487, 0
    %v599 = vsel %vm180, %v490, 0
    %601 = vmatpush.msra.mxu0 0.0
    %602 = vmatpush.msra.mxu0 0.0
    %603 = vmatpush.msra.mxu0 0.0
    %604 = vmatpush.msra.mxu0 0.0
    %605 = vmatpush.msra.mxu0 0.0
    %606 = vmatpush.msra.mxu0 0.0
    %607 = vmatpush.msra.mxu0 0.0
    %608 = vmatpush.msra.mxu0 0.0
    %609 = vmatpush.msra.mxu0 0.0
    %610 = vmatpush.msra.mxu0 0.0
    %611 = vmatpush.msra.mxu0 0.0
    %612 = vmatpush.msra.mxu0 0.0
    %613 = vmatpush.msra.mxu0 0.0
    %614 = vmatpush.msra.mxu0 0.0
    %615 = vmatpush.msra.mxu0 0.0
    %616 = vmatpush.msra.mxu0 %v563
    %617 = vmatmul.f32.gmra.mxu0 %v596
    %v618 = vpop.f32.mrf.mxu0
    %v619 = vadd.f32 0.0, %v618
    %620 = vmatmul.f32.gmra.mxu0 %v599
    %v621 = vpop.f32.mrf.mxu0
    %v622 = vadd.f32 0.0, %v621
    %623 = vdwg.mxu0
    %v625 = vsel %vm180, %v522, 0
    %v628 = vsel %vm180, %v525, 0
    %630 = vmatpush.msra.mxu0 0.0
    %631 = vmatpush.msra.mxu0 0.0
    %632 = vmatpush.msra.mxu0 0.0
    %633 = vmatpush.msra.mxu0 0.0
    %634 = vmatpush.msra.mxu0 0.0
    %635 = vmatpush.msra.mxu0 0.0
    %636 = vmatpush.msra.mxu0 0.0
    %637 = vmatpush.msra.mxu0 0.0
    %638 = vmatpush.msra.mxu0 0.0
    %639 = vmatpush.msra.mxu0 0.0
    %640 = vmatpush.msra.mxu0 0.0
    %641 = vmatpush.msra.mxu0 0.0
    %642 = vmatpush.msra.mxu0 0.0
    %643 = vmatpush.msra.mxu0 0.0
    %644 = vmatpush.msra.mxu0 0.0
    %645 = vmatpush.msra.mxu0 %v564
    %646 = vmatmul.f32.gmra.mxu0 %v625
    %v647 = vpop.f32.mrf.mxu0
    %v648 = vadd.f32 0.0, %v647
    %649 = vmatmul.f32.gmra.mxu0 %v628
    %v650 = vpop.f32.mrf.mxu0
    %v651 = vadd.f32 0.0, %v650
    %652 = vdwg.mxu0
    %v654 = vsel %vm180, %v557, 0
    %v657 = vsel %vm180, %v560, 0
    %659 = vmatpush.msra.mxu0 0.0
    %660 = vmatpush.msra.mxu0 0.0
    %661 = vmatpush.msra.mxu0 0.0
    %662 = vmatpush.msra.mxu0 0.0
    %663 = vmatpush.msra.mxu0 0.0
    %664 = vmatpush.msra.mxu0 0.0
    %665 = vmatpush.msra.mxu0 0.0
    %666 = vmatpush.msra.mxu0 0.0
    %667 = vmatpush.msra.mxu0 0.0
    %668 = vmatpush.msra.mxu0 0.0
    %669 = vmatpush.msra.mxu0 0.0
    %670 = vmatpush.msra.mxu0 0.0
    %671 = vmatpush.msra.mxu0 0.0
    %672 = vmatpush.msra.mxu0 0.0
    %673 = vmatpush.msra.mxu0 0.0
    %674 = vmatpush.msra.mxu0 %v565
    %675 = vmatmul.f32.gmra.mxu0 %v654
    %v676 = vpop.f32.mrf.mxu0
    %v677 = vadd.f32 0.0, %v676
    %678 = vmatmul.f32.gmra.mxu0 %v657
    %v679 = vpop.f32.mrf.mxu0
    %v680 = vadd.f32 0.0, %v679
    %681 = vdwg.mxu0
    %v682 = vsel %vm61, %v590, 0.0
    %v683 = vsel %vm61, %v619, 0.0
    %v684 = vadd.f32 %v682, %v683
    %v685 = vsel %vm61, %v648, 0.0
    %v686 = vadd.f32 %v684, %v685
    %v687 = vsel %vm61, %v677, 0.0
    %v688 = vadd.f32 %v686, %v687
    %v689 = vsel %vm61, %v593, 0.0
    %v690 = vsel %vm61, %v622, 0.0
    %v691 = vadd.f32 %v689, %v690
    %v692 = vsel %vm61, %v651, 0.0
    %v693 = vadd.f32 %v691, %v692
    %v694 = vsel %vm61, %v680, 0.0
    %v695 = vadd.f32 %v693, %v694
    %v696 = vld [vmem:[%s8] sm:$0x1]
    %v698 = vperm.slane %v696, 0
    %v700 = vadd.f32 %v688, %v698
    %v701 = vadd.f32 %v695, %v698
    %v702 = vadd.f32 %v121, %v700
    %v703 = vadd.f32 %v122, %v701
    %v704 = vld [vmem:[%s13] sm:$0x1]
    %v705 = vld [vmem:[%s14] sm:$0x1]
    %v706 = vsel %vm61, %v702, 0.0
    %707 = vadd.xlane.f32.xlu0 %v706
    %v708 = vpop.xlane.xlu0 %707
    %v709 = vsel %vm61, %v703, 0.0
    %710 = vadd.xlane.f32.xlu0 %v709
    %v711 = vpop.xlane.xlu0 %710
    %v712 = vmul.f32 %v708, %v74
    %v713 = vmul.f32 %v711, %v74
    %v714 = vsub.f32 %v702, %v712
    %v715 = vsub.f32 %v703, %v713
    %v716 = vmul.f32 %v714, %v714
    %v717 = vmul.f32 %v715, %v715
    %v718 = vsel %vm61, %v716, 0.0
    %719 = vadd.xlane.f32.xlu0 %v718
    %v720 = vpop.xlane.xlu0 %719
    %v721 = vsel %vm61, %v717, 0.0
    %722 = vadd.xlane.f32.xlu0 %v721
    %v723 = vpop.xlane.xlu0 %722
    %v724 = vmul.f32 %v720, %v74
    %v725 = vmul.f32 %v723, %v74
    %v726 = vadd.f32 %v724, 1e-12
    %v727 = vadd.f32 %v725, 1e-12
    %v728 = vrsqrt.pop %v726
    %v729 = vmul.f32 %v728, %v726
    %v730 = vmul.f32 %v729, %v728
    %v731 = vmul.f32 0.5, %v730
    %v732 = vsub.f32 1.5, %v731
    %v733 = vmul.f32 %v728, %v732
    %vm734 = vweird.f32 %v726
    %vm735 = vweird.f32 %v728
    %vm736 = vmor %vm734, %vm735
    %v737 = vsel %vm736, %v728, %v733
    %v738 = vrsqrt.pop %v727
    %v739 = vmul.f32 %v738, %v727
    %v740 = vmul.f32 %v739, %v738
    %v741 = vmul.f32 0.5, %v740
    %v742 = vsub.f32 1.5, %v741
    %v743 = vmul.f32 %v738, %v742
    %vm744 = vweird.f32 %v727
    %vm745 = vweird.f32 %v738
    %vm746 = vmor %vm744, %vm745
    %v747 = vsel %vm746, %v738, %v743
    %v748 = vmul.f32 %v714, %v737
    %v749 = vmul.f32 %v715, %v747
    %v751 = vperm.slane %v704, 0
    %v753 = vmul.f32 %v748, %v751
    %v754 = vmul.f32 %v749, %v751
    %v756 = vperm.slane %v705, 0
    %v758 = vadd.f32 %v753, %v756
    %v759 = vadd.f32 %v754, %v756
    %v760 = vld [vmem:[%s9] sm:$0xff]
    %v761 = vld [vmem:[%s9 + $0x8] sm:$0xff]
    %v762 = vld [vmem:[%s9 + $0x10] sm:$0xff]
    %v763 = vld [vmem:[%s9 + $0x18] sm:$0xff]
    %v764 = vld [vmem:[%s10] sm:$0x1]
    %v766 = vperm.slane %v764, 0
    %v769 = vsel %vm61, %v758, 0
    %v772 = vsel %vm61, %v759, 0
    %774 = vmatpush.msra.mxu0 0.0
    %775 = vmatpush.msra.mxu0 0.0
    %776 = vmatpush.msra.mxu0 0.0
    %777 = vmatpush.msra.mxu0 0.0
    %778 = vmatpush.msra.mxu0 0.0
    %779 = vmatpush.msra.mxu0 0.0
    %780 = vmatpush.msra.mxu0 0.0
    %781 = vmatpush.msra.mxu0 0.0
    %782 = vmatpush.msra.mxu0 0.0
    %783 = vmatpush.msra.mxu0 0.0
    %784 = vmatpush.msra.mxu0 0.0
    %785 = vmatpush.msra.mxu0 0.0
    %786 = vmatpush.msra.mxu0 %v763
    %787 = vmatpush.msra.mxu0 %v762
    %788 = vmatpush.msra.mxu0 %v761
    %789 = vmatpush.msra.mxu0 %v760
    %790 = vmatmul.f32.gmra.mxu0 %v769
    %v791 = vpop.f32.mrf.mxu0
    %v792 = vadd.f32 %v766, %v791
    %793 = vmatmul.f32.gmra.mxu0 %v772
    %v794 = vpop.f32.mrf.mxu0
    %v795 = vadd.f32 %v766, %v794
    %796 = vdwg.mxu0
    %v797 = vmul.f32 %v792, 0.5
    %v798 = vmul.f32 %v795, 0.5
    %v799 = vmul.f32 %v792, 0.70710677
    %v800 = vmul.f32 %v795, 0.70710677
    %vm801 = vcmp.ge.f32.partialorder %v799, 0.0
    %vm802 = vcmp.ge.f32.partialorder %v800, 0.0
    %v803 = vsel %vm801, 1.0, -1.0
    %v804 = vsel %vm802, 1.0, -1.0
    %v805 = vand.u32 2147483647, %v799
    %v806 = vand.u32 2147483647, %v800
    %v807 = vmul.f32 %v805, 0.3275911
    %v808 = vmul.f32 %v806, 0.3275911
    %v809 = vadd.f32 %v807, 1.0
    %v810 = vadd.f32 %v808, 1.0
    %v811 = vrcp.pop %v809
    %v812 = vmul.f32 %v809, %v811
    %v813 = vsub.f32 1.0, %v812
    %v814 = vmul.f32 %v811, %v813
    %v815 = vadd.f32 %v811, %v814
    %vm816 = vweird.f32 %v809
    %vm817 = vweird.f32 %v811
    %vm818 = vmor %vm816, %vm817
    %v819 = vsel %vm818, %v811, %v815
    %v820 = vand.u32 2147483647, %v809
    %vm821 = vcmp.eq.f32.partialorder %v820, 8.507059e+37
    %v822 = vand.u32 %v809, 2147483648
    %v823 = vor.u32 1.1754944e-38, %v822
    %v824 = vsel %vm821, %v823, %v819
    %v825 = vmul.f32 1.0, %v824
    %v826 = vrcp.pop %v810
    %v827 = vmul.f32 %v810, %v826
    %v828 = vsub.f32 1.0, %v827
    %v829 = vmul.f32 %v826, %v828
    %v830 = vadd.f32 %v826, %v829
    %vm831 = vweird.f32 %v810
    %vm832 = vweird.f32 %v826
    %vm833 = vmor %vm831, %vm832
    %v834 = vsel %vm833, %v826, %v830
    %v835 = vand.u32 2147483647, %v810
    %vm836 = vcmp.eq.f32.partialorder %v835, 8.507059e+37
    %v837 = vand.u32 %v810, 2147483648
    %v838 = vor.u32 1.1754944e-38, %v837
    %v839 = vsel %vm836, %v838, %v834
    %v840 = vmul.f32 1.0, %v839
    %v841 = vmul.f32 %v825, 1.0614054
    %v842 = vmul.f32 %v840, 1.0614054
    %v843 = vadd.f32 %v841, -1.4531521
    %v844 = vadd.f32 %v842, -1.4531521
    %v845 = vmul.f32 %v843, %v825
    %v846 = vmul.f32 %v844, %v840
    %v847 = vadd.f32 %v845, 1.4214138
    %v848 = vadd.f32 %v846, 1.4214138
    %v849 = vmul.f32 %v847, %v825
    %v850 = vmul.f32 %v848, %v840
    %v851 = vadd.f32 %v849, -0.28449672
    %v852 = vadd.f32 %v850, -0.28449672
    %v853 = vmul.f32 %v851, %v825
    %v854 = vmul.f32 %v852, %v840
    %v855 = vadd.f32 %v853, 0.2548296
    %v856 = vadd.f32 %v854, 0.2548296
    %v857 = vmul.f32 %v855, %v825
    %v858 = vmul.f32 %v856, %v840
    %v859 = vsub.f32 0.0, %v805
    %v860 = vsub.f32 0.0, %v806
    %v861 = vmul.f32 %v859, %v805
    %v862 = vmul.f32 %v860, %v806
    %v863 = vmul.f32 %v861, 1.442695
    %v864 = vpow.pop %v863
    %v865 = vmul.f32 %v862, 1.442695
    %v866 = vpow.pop %v865
    %v867 = vmul.f32 %v857, %v864
    %v868 = vmul.f32 %v858, %v866
    %v869 = vsub.f32 1.0, %v867
    %v870 = vsub.f32 1.0, %v868
    %v871 = vmul.f32 %v803, %v869
    %v872 = vmul.f32 %v804, %v870
    %v873 = vadd.f32 %v871, 1.0
    %v874 = vadd.f32 %v872, 1.0
    %v875 = vmul.f32 %v797, %v873
    %v876 = vmul.f32 %v798, %v874
    %v877 = vld [vmem:[%s11] sm:$0xff]
    %v878 = vld [vmem:[%s11 + $0x8] sm:$0xff]
    %v879 = vld [vmem:[%s11 + $0x10] sm:$0xff]
    %v880 = vld [vmem:[%s11 + $0x18] sm:$0xff]
    %v881 = vld [vmem:[%s11 + $0x20] sm:$0xff]
    %v882 = vld [vmem:[%s11 + $0x28] sm:$0xff]
    %v883 = vld [vmem:[%s11 + $0x30] sm:$0xff]
    %v884 = vld [vmem:[%s11 + $0x38] sm:$0xff]
    %v885 = vld [vmem:[%s12] sm:$0x1]
    %v887 = vperm.slane %v885, 0
    %vm889 = vcmask 523264
    %v891 = vsel %vm889, %v875, 0
    %v894 = vsel %vm889, %v876, 0
    %896 = vmatpush.msra.mxu0 0.0
    %897 = vmatpush.msra.mxu0 0.0
    %898 = vmatpush.msra.mxu0 0.0
    %899 = vmatpush.msra.mxu0 0.0
    %900 = vmatpush.msra.mxu0 0.0
    %901 = vmatpush.msra.mxu0 0.0
    %902 = vmatpush.msra.mxu0 0.0
    %903 = vmatpush.msra.mxu0 0.0
    %904 = vmatpush.msra.mxu0 %v884
    %905 = vmatpush.msra.mxu0 %v883
    %906 = vmatpush.msra.mxu0 %v882
    %907 = vmatpush.msra.mxu0 %v881
    %908 = vmatpush.msra.mxu0 %v880
    %909 = vmatpush.msra.mxu0 %v879
    %910 = vmatpush.msra.mxu0 %v878
    %911 = vmatpush.msra.mxu0 %v877
    %912 = vmatmul.f32.gmra.mxu0 %v891
    %v913 = vpop.f32.mrf.mxu0
    %v914 = vadd.f32 %v887, %v913
    %915 = vmatmul.f32.gmra.mxu0 %v894
    %v916 = vpop.f32.mrf.mxu0
    %v917 = vadd.f32 %v887, %v916
    %918 = vdwg.mxu0
    %v919 = vadd.f32 %v758, %v914
    %v920 = vadd.f32 %v759, %v917
    %v921 = vld [vmem:[%s15] sm:$0x1]
    %v922 = vld [vmem:[%s16] sm:$0x1]
    %v923 = vsel %vm61, %v919, 0.0
    %924 = vadd.xlane.f32.xlu0 %v923
    %v925 = vpop.xlane.xlu0 %924
    %v926 = vsel %vm61, %v920, 0.0
    %927 = vadd.xlane.f32.xlu0 %v926
    %v928 = vpop.xlane.xlu0 %927
    %v929 = vmul.f32 %v925, %v74
    %v930 = vmul.f32 %v928, %v74
    %v931 = vsub.f32 %v919, %v929
    %v932 = vsub.f32 %v920, %v930
    %v933 = vmul.f32 %v931, %v931
    %v934 = vmul.f32 %v932, %v932
    %v935 = vsel %vm61, %v933, 0.0
    %936 = vadd.xlane.f32.xlu0 %v935
    %v937 = vpop.xlane.xlu0 %936
    %v938 = vsel %vm61, %v934, 0.0
    %939 = vadd.xlane.f32.xlu0 %v938
    %v940 = vpop.xlane.xlu0 %939
    %v941 = vmul.f32 %v937, %v74
    %v942 = vmul.f32 %v940, %v74
    %v943 = vadd.f32 %v941, 1e-12
    %v944 = vadd.f32 %v942, 1e-12
    %v945 = vrsqrt.pop %v943
    %v946 = vmul.f32 %v945, %v943
    %v947 = vmul.f32 %v946, %v945
    %v948 = vmul.f32 0.5, %v947
    %v949 = vsub.f32 1.5, %v948
    %v950 = vmul.f32 %v945, %v949
    %vm951 = vweird.f32 %v943
    %vm952 = vweird.f32 %v945
    %vm953 = vmor %vm951, %vm952
    %v954 = vsel %vm953, %v945, %v950
    %v955 = vrsqrt.pop %v944
    %v956 = vmul.f32 %v955, %v944
    %v957 = vmul.f32 %v956, %v955
    %v958 = vmul.f32 0.5, %v957
    %v959 = vsub.f32 1.5, %v958
    %v960 = vmul.f32 %v955, %v959
    %vm961 = vweird.f32 %v944
    %vm962 = vweird.f32 %v955
    %vm963 = vmor %vm961, %vm962
    %v964 = vsel %vm963, %v955, %v960
    %v965 = vmul.f32 %v931, %v954
    %v966 = vmul.f32 %v932, %v964
    %v968 = vperm.slane %v921, 0
    %v970 = vmul.f32 %v965, %v968
    %v971 = vmul.f32 %v966, %v968
    %v973 = vperm.slane %v922, 0
    %v975 = vadd.f32 %v970, %v973
    %v976 = vadd.f32 %v971, %v973
    %s977 = scalar_lea.vmem %s5, 32
    %v978 = vld [vmem:[%s977] sm:$0xff]
    %v979 = vld [vmem:[%s977 + $0x8] sm:$0xff]
    %v980 = vld [vmem:[%s977 + $0x10] sm:$0xff]
    %v981 = vld [vmem:[%s977 + $0x18] sm:$0xff]
    %s982 = scalar_lea.vmem %s6, 1
    %v983 = vld [vmem:[%s982] sm:$0x1]
    %v985 = vperm.slane %v983, 0
    %v988 = vsel %vm61, %v975, 0
    %v991 = vsel %vm61, %v976, 0
    %993 = vmatpush.msra.mxu0 0.0
    %994 = vmatpush.msra.mxu0 0.0
    %995 = vmatpush.msra.mxu0 0.0
    %996 = vmatpush.msra.mxu0 0.0
    %997 = vmatpush.msra.mxu0 0.0
    %998 = vmatpush.msra.mxu0 0.0
    %999 = vmatpush.msra.mxu0 0.0
    %1000 = vmatpush.msra.mxu0 0.0
    %1001 = vmatpush.msra.mxu0 0.0
    %1002 = vmatpush.msra.mxu0 0.0
    %1003 = vmatpush.msra.mxu0 0.0
    %1004 = vmatpush.msra.mxu0 0.0
    %1005 = vmatpush.msra.mxu0 %v981
    %1006 = vmatpush.msra.mxu0 %v980
    %1007 = vmatpush.msra.mxu0 %v979
    %1008 = vmatpush.msra.mxu0 %v978
    %1009 = vmatmul.f32.gmra.mxu0 %v988
    %v1010 = vpop.f32.mrf.mxu0
    %v1011 = vadd.f32 %v985, %v1010
    %1012 = vmatmul.f32.gmra.mxu0 %v991
    %v1013 = vpop.f32.mrf.mxu0
    %v1014 = vadd.f32 %v985, %v1013
    %1015 = vdwg.mxu0
    %1018 = vrot.lane.b32.xlu0 %v1011, 120
    %v1019 = vpop.permute.xlu0 %1018
    %1020 = vrot.lane.b32.xlu0 %v1014, 120
    %v1021 = vpop.permute.xlu0 %1020
    %1022 = vrot.lane.b32.xlu0 %v1011, 112
    %v1023 = vpop.permute.xlu0 %1022
    %1024 = vrot.lane.b32.xlu0 %v1014, 112
    %v1025 = vpop.permute.xlu0 %1024
    %1026 = vrot.lane.b32.xlu0 %v1011, 104
    %v1027 = vpop.permute.xlu0 %1026
    %1028 = vrot.lane.b32.xlu0 %v1014, 104
    %v1029 = vpop.permute.xlu0 %1028
    %1030 = vrot.lane.b32.xlu0 %v1011, 96
    %v1031 = vpop.permute.xlu0 %1030
    %1032 = vrot.lane.b32.xlu0 %v1014, 96
    %v1033 = vpop.permute.xlu0 %1032
    %v1034 = vsel %vm180, %v1011, 0
    %v1036 = vsel %vm180, %v1014, 0
    %v1038 = vsel %vm180, %v1031, 0
    %v1040 = vsel %vm180, %v1033, 0
    %1042 = vmatpush.xpose.msra.mxu0 0.0
    %1043 = vmatpush.xpose.msra.mxu0 0.0
    %1044 = vmatpush.xpose.msra.mxu0 0.0
    %1045 = vmatpush.xpose.msra.mxu0 0.0
    %1046 = vmatpush.xpose.msra.mxu0 0.0
    %1047 = vmatpush.xpose.msra.mxu0 0.0
    %1048 = vmatpush.xpose.msra.mxu0 0.0
    %1049 = vmatpush.xpose.msra.mxu0 0.0
    %1050 = vmatpush.xpose.msra.mxu0 0.0
    %1051 = vmatpush.xpose.msra.mxu0 0.0
    %1052 = vmatpush.xpose.msra.mxu0 0.0
    %1053 = vmatpush.xpose.msra.mxu0 0.0
    %1054 = vmatpush.xpose.msra.mxu0 0.0
    %1055 = vmatpush.xpose.msra.mxu0 0.0
    %1056 = vmatpush.xpose.msra.mxu0 %v1040
    %1057 = vmatpush.xpose.msra.mxu0 %v1038
    %1058 = vmatmul.f32.gmra.mxu0 %v1034
    %v1059 = vpop.f32.mrf.mxu0
    %v1060 = vadd.f32 0.0, %v1059
    %1061 = vmatmul.f32.gmra.mxu0 %v1036
    %v1062 = vpop.f32.mrf.mxu0
    %v1063 = vadd.f32 0.0, %v1062
    %1064 = vdwg.mxu0
    %1065 = vrot.lane.b32.xlu0 %v1019, 96
    %v1066 = vpop.permute.xlu0 %1065
    %1067 = vrot.lane.b32.xlu0 %v1021, 96
    %v1068 = vpop.permute.xlu0 %1067
    %v1069 = vsel %vm180, %v1019, 0
    %v1071 = vsel %vm180, %v1021, 0
    %v1073 = vsel %vm180, %v1066, 0
    %v1075 = vsel %vm180, %v1068, 0
    %1077 = vmatpush.xpose.msra.mxu0 0.0
    %1078 = vmatpush.xpose.msra.mxu0 0.0
    %1079 = vmatpush.xpose.msra.mxu0 0.0
    %1080 = vmatpush.xpose.msra.mxu0 0.0
    %1081 = vmatpush.xpose.msra.mxu0 0.0
    %1082 = vmatpush.xpose.msra.mxu0 0.0
    %1083 = vmatpush.xpose.msra.mxu0 0.0
    %1084 = vmatpush.xpose.msra.mxu0 0.0
    %1085 = vmatpush.xpose.msra.mxu0 0.0
    %1086 = vmatpush.xpose.msra.mxu0 0.0
    %1087 = vmatpush.xpose.msra.mxu0 0.0
    %1088 = vmatpush.xpose.msra.mxu0 0.0
    %1089 = vmatpush.xpose.msra.mxu0 0.0
    %1090 = vmatpush.xpose.msra.mxu0 0.0
    %1091 = vmatpush.xpose.msra.mxu0 %v1075
    %1092 = vmatpush.xpose.msra.mxu0 %v1073
    %1093 = vmatmul.f32.gmra.mxu0 %v1069
    %v1094 = vpop.f32.mrf.mxu0
    %v1095 = vadd.f32 0.0, %v1094
    %1096 = vmatmul.f32.gmra.mxu0 %v1071
    %v1097 = vpop.f32.mrf.mxu0
    %v1098 = vadd.f32 0.0, %v1097
    %1099 = vdwg.mxu0
    %1100 = vrot.lane.b32.xlu0 %v1023, 96
    %v1101 = vpop.permute.xlu0 %1100
    %1102 = vrot.lane.b32.xlu0 %v1025, 96
    %v1103 = vpop.permute.xlu0 %1102
    %v1104 = vsel %vm180, %v1023, 0
    %v1106 = vsel %vm180, %v1025, 0
    %v1108 = vsel %vm180, %v1101, 0
    %v1110 = vsel %vm180, %v1103, 0
    %1112 = vmatpush.xpose.msra.mxu0 0.0
    %1113 = vmatpush.xpose.msra.mxu0 0.0
    %1114 = vmatpush.xpose.msra.mxu0 0.0
    %1115 = vmatpush.xpose.msra.mxu0 0.0
    %1116 = vmatpush.xpose.msra.mxu0 0.0
    %1117 = vmatpush.xpose.msra.mxu0 0.0
    %1118 = vmatpush.xpose.msra.mxu0 0.0
    %1119 = vmatpush.xpose.msra.mxu0 0.0
    %1120 = vmatpush.xpose.msra.mxu0 0.0
    %1121 = vmatpush.xpose.msra.mxu0 0.0
    %1122 = vmatpush.xpose.msra.mxu0 0.0
    %1123 = vmatpush.xpose.msra.mxu0 0.0
    %1124 = vmatpush.xpose.msra.mxu0 0.0
    %1125 = vmatpush.xpose.msra.mxu0 0.0
    %1126 = vmatpush.xpose.msra.mxu0 %v1110
    %1127 = vmatpush.xpose.msra.mxu0 %v1108
    %1128 = vmatmul.f32.gmra.mxu0 %v1104
    %v1129 = vpop.f32.mrf.mxu0
    %v1130 = vadd.f32 0.0, %v1129
    %1131 = vmatmul.f32.gmra.mxu0 %v1106
    %v1132 = vpop.f32.mrf.mxu0
    %v1133 = vadd.f32 0.0, %v1132
    %1134 = vdwg.mxu0
    %1135 = vrot.lane.b32.xlu0 %v1027, 96
    %v1136 = vpop.permute.xlu0 %1135
    %1137 = vrot.lane.b32.xlu0 %v1029, 96
    %v1138 = vpop.permute.xlu0 %1137
    %v1139 = vsel %vm180, %v1027, 0
    %v1141 = vsel %vm180, %v1029, 0
    %v1143 = vsel %vm180, %v1136, 0
    %v1145 = vsel %vm180, %v1138, 0
    %1147 = vmatpush.xpose.msra.mxu0 0.0
    %1148 = vmatpush.xpose.msra.mxu0 0.0
    %1149 = vmatpush.xpose.msra.mxu0 0.0
    %1150 = vmatpush.xpose.msra.mxu0 0.0
    %1151 = vmatpush.xpose.msra.mxu0 0.0
    %1152 = vmatpush.xpose.msra.mxu0 0.0
    %1153 = vmatpush.xpose.msra.mxu0 0.0
    %1154 = vmatpush.xpose.msra.mxu0 0.0
    %1155 = vmatpush.xpose.msra.mxu0 0.0
    %1156 = vmatpush.xpose.msra.mxu0 0.0
    %1157 = vmatpush.xpose.msra.mxu0 0.0
    %1158 = vmatpush.xpose.msra.mxu0 0.0
    %1159 = vmatpush.xpose.msra.mxu0 0.0
    %1160 = vmatpush.xpose.msra.mxu0 0.0
    %1161 = vmatpush.xpose.msra.mxu0 %v1145
    %1162 = vmatpush.xpose.msra.mxu0 %v1143
    %1163 = vmatmul.f32.gmra.mxu0 %v1139
    %v1164 = vpop.f32.mrf.mxu0
    %v1165 = vadd.f32 0.0, %v1164
    %1166 = vmatmul.f32.gmra.mxu0 %v1141
    %v1167 = vpop.f32.mrf.mxu0
    %v1168 = vadd.f32 0.0, %v1167
    %1169 = vdwg.mxu0
    %v1170 = vmul.f32 %v1060, 0.35355338
    %v1171 = vmul.f32 %v1063, 0.35355338
    %v1172 = vmul.f32 %v1095, 0.35355338
    %v1173 = vmul.f32 %v1098, 0.35355338
    %v1174 = vmul.f32 %v1130, 0.35355338
    %v1175 = vmul.f32 %v1133, 0.35355338
    %v1176 = vmul.f32 %v1165, 0.35355338
    %v1177 = vmul.f32 %v1168, 0.35355338
    %v1178 = vadd.f32 %v1170, %v123
    %v1179 = vadd.f32 %v1171, %v124
    %v1180 = vadd.f32 %v1172, %v123
    %v1181 = vadd.f32 %v1173, %v124
    %v1182 = vadd.f32 %v1174, %v123
    %v1183 = vadd.f32 %v1175, %v124
    %v1184 = vadd.f32 %v1176, %v123
    %v1185 = vadd.f32 %v1177, %v124
    %v1186 = vsel %vm333, %v1178, -inf
    %1187 = vmax.xlane.f32.xlu0 %v1186
    %v1188 = vpop.xlane.xlu0 %1187
    %v1189 = vsel %vm333, %v1179, -inf
    %1190 = vmax.xlane.f32.xlu0 %v1189
    %v1191 = vpop.xlane.xlu0 %1190
    %v1192 = vsel %vm333, %v1180, -inf
    %1193 = vmax.xlane.f32.xlu0 %v1192
    %v1194 = vpop.xlane.xlu0 %1193
    %v1195 = vsel %vm333, %v1181, -inf
    %1196 = vmax.xlane.f32.xlu0 %v1195
    %v1197 = vpop.xlane.xlu0 %1196
    %v1198 = vsel %vm333, %v1182, -inf
    %1199 = vmax.xlane.f32.xlu0 %v1198
    %v1200 = vpop.xlane.xlu0 %1199
    %v1201 = vsel %vm333, %v1183, -inf
    %1202 = vmax.xlane.f32.xlu0 %v1201
    %v1203 = vpop.xlane.xlu0 %1202
    %v1204 = vsel %vm333, %v1184, -inf
    %1205 = vmax.xlane.f32.xlu0 %v1204
    %v1206 = vpop.xlane.xlu0 %1205
    %v1207 = vsel %vm333, %v1185, -inf
    %1208 = vmax.xlane.f32.xlu0 %v1207
    %v1209 = vpop.xlane.xlu0 %1208
    %v1210 = vsub.f32 %v1178, %v1188
    %v1211 = vsub.f32 %v1179, %v1191
    %v1212 = vsub.f32 %v1180, %v1194
    %v1213 = vsub.f32 %v1181, %v1197
    %v1214 = vsub.f32 %v1182, %v1200
    %v1215 = vsub.f32 %v1183, %v1203
    %v1216 = vsub.f32 %v1184, %v1206
    %v1217 = vsub.f32 %v1185, %v1209
    %v1218 = vmul.f32 %v1210, 1.442695
    %v1219 = vpow.pop %v1218
    %v1220 = vmul.f32 %v1211, 1.442695
    %v1221 = vpow.pop %v1220
    %v1222 = vmul.f32 %v1212, 1.442695
    %v1223 = vpow.pop %v1222
    %v1224 = vmul.f32 %v1213, 1.442695
    %v1225 = vpow.pop %v1224
    %v1226 = vmul.f32 %v1214, 1.442695
    %v1227 = vpow.pop %v1226
    %v1228 = vmul.f32 %v1215, 1.442695
    %v1229 = vpow.pop %v1228
    %v1230 = vmul.f32 %v1216, 1.442695
    %v1231 = vpow.pop %v1230
    %v1232 = vmul.f32 %v1217, 1.442695
    %v1233 = vpow.pop %v1232
    %v1234 = vsel %vm333, %v1219, 0.0
    %1235 = vadd.xlane.f32.xlu0 %v1234
    %v1236 = vpop.xlane.xlu0 %1235
    %v1237 = vsel %vm333, %v1221, 0.0
    %1238 = vadd.xlane.f32.xlu0 %v1237
    %v1239 = vpop.xlane.xlu0 %1238
    %v1240 = vsel %vm333, %v1223, 0.0
    %1241 = vadd.xlane.f32.xlu0 %v1240
    %v1242 = vpop.xlane.xlu0 %1241
    %v1243 = vsel %vm333, %v1225, 0.0
    %1244 = vadd.xlane.f32.xlu0 %v1243
    %v1245 = vpop.xlane.xlu0 %1244
    %v1246 = vsel %vm333, %v1227, 0.0
    %1247 = vadd.xlane.f32.xlu0 %v1246
    %v1248 = vpop.xlane.xlu0 %1247
    %v1249 = vsel %vm333, %v1229, 0.0
    %1250 = vadd.xlane.f32.xlu0 %v1249
    %v1251 = vpop.xlane.xlu0 %1250
    %v1252 = vsel %vm333, %v1231, 0.0
    %1253 = vadd.xlane.f32.xlu0 %v1252
    %v1254 = vpop.xlane.xlu0 %1253
    %v1255 = vsel %vm333, %v1233, 0.0
    %1256 = vadd.xlane.f32.xlu0 %v1255
    %v1257 = vpop.xlane.xlu0 %1256
    %v1258 = vrcp.pop %v1236
    %v1259 = vrcp.pop %v1239
    %v1260 = vrcp.pop %v1242
    %v1261 = vrcp.pop %v1245
    %v1262 = vrcp.pop %v1248
    %v1263 = vrcp.pop %v1251
    %v1264 = vrcp.pop %v1254
    %v1265 = vrcp.pop %v1257
    %v1266 = vmul.f32 %v1219, %v1258
    %v1267 = vmul.f32 %v1221, %v1259
    %v1268 = vmul.f32 %v1223, %v1260
    %v1269 = vmul.f32 %v1225, %v1261
    %v1270 = vmul.f32 %v1227, %v1262
    %v1271 = vmul.f32 %v1229, %v1263
    %v1272 = vmul.f32 %v1231, %v1264
    %v1273 = vmul.f32 %v1233, %v1265
    %1274 = vrot.lane.b32.xlu0 %v1011, 64
    %v1275 = vpop.permute.xlu0 %1274
    %1276 = vrot.lane.b32.xlu0 %v1014, 64
    %v1277 = vpop.permute.xlu0 %1276
    %v1281 = vsel %vm333, %v1266, 0
    %v1284 = vsel %vm333, %v1267, 0
    %1286 = vmatpush.msra.mxu0 0.0
    %1287 = vmatpush.msra.mxu0 0.0
    %1288 = vmatpush.msra.mxu0 0.0
    %1289 = vmatpush.msra.mxu0 0.0
    %1290 = vmatpush.msra.mxu0 0.0
    %1291 = vmatpush.msra.mxu0 0.0
    %1292 = vmatpush.msra.mxu0 0.0
    %1293 = vmatpush.msra.mxu0 0.0
    %1294 = vmatpush.msra.mxu0 0.0
    %1295 = vmatpush.msra.mxu0 0.0
    %1296 = vmatpush.msra.mxu0 0.0
    %1297 = vmatpush.msra.mxu0 0.0
    %1298 = vmatpush.msra.mxu0 0.0
    %1299 = vmatpush.msra.mxu0 0.0
    %1300 = vmatpush.msra.mxu0 %v1277
    %1301 = vmatpush.msra.mxu0 %v1275
    %1302 = vmatmul.f32.gmra.mxu0 %v1281
    %v1303 = vpop.f32.mrf.mxu0
    %v1304 = vadd.f32 0.0, %v1303
    %1305 = vmatmul.f32.gmra.mxu0 %v1284
    %v1306 = vpop.f32.mrf.mxu0
    %v1307 = vadd.f32 0.0, %v1306
    %1308 = vdwg.mxu0
    %1309 = vrot.lane.b32.xlu0 %v1019, 64
    %v1310 = vpop.permute.xlu0 %1309
    %1311 = vrot.lane.b32.xlu0 %v1021, 64
    %v1312 = vpop.permute.xlu0 %1311
    %v1316 = vsel %vm333, %v1268, 0
    %v1319 = vsel %vm333, %v1269, 0
    %1321 = vmatpush.msra.mxu0 0.0
    %1322 = vmatpush.msra.mxu0 0.0
    %1323 = vmatpush.msra.mxu0 0.0
    %1324 = vmatpush.msra.mxu0 0.0
    %1325 = vmatpush.msra.mxu0 0.0
    %1326 = vmatpush.msra.mxu0 0.0
    %1327 = vmatpush.msra.mxu0 0.0
    %1328 = vmatpush.msra.mxu0 0.0
    %1329 = vmatpush.msra.mxu0 0.0
    %1330 = vmatpush.msra.mxu0 0.0
    %1331 = vmatpush.msra.mxu0 0.0
    %1332 = vmatpush.msra.mxu0 0.0
    %1333 = vmatpush.msra.mxu0 0.0
    %1334 = vmatpush.msra.mxu0 0.0
    %1335 = vmatpush.msra.mxu0 %v1312
    %1336 = vmatpush.msra.mxu0 %v1310
    %1337 = vmatmul.f32.gmra.mxu0 %v1316
    %v1338 = vpop.f32.mrf.mxu0
    %v1339 = vadd.f32 0.0, %v1338
    %1340 = vmatmul.f32.gmra.mxu0 %v1319
    %v1341 = vpop.f32.mrf.mxu0
    %v1342 = vadd.f32 0.0, %v1341
    %1343 = vdwg.mxu0
    %1344 = vrot.lane.b32.xlu0 %v1023, 64
    %v1345 = vpop.permute.xlu0 %1344
    %1346 = vrot.lane.b32.xlu0 %v1025, 64
    %v1347 = vpop.permute.xlu0 %1346
    %v1351 = vsel %vm333, %v1270, 0
    %v1354 = vsel %vm333, %v1271, 0
    %1356 = vmatpush.msra.mxu0 0.0
    %1357 = vmatpush.msra.mxu0 0.0
    %1358 = vmatpush.msra.mxu0 0.0
    %1359 = vmatpush.msra.mxu0 0.0
    %1360 = vmatpush.msra.mxu0 0.0
    %1361 = vmatpush.msra.mxu0 0.0
    %1362 = vmatpush.msra.mxu0 0.0
    %1363 = vmatpush.msra.mxu0 0.0
    %1364 = vmatpush.msra.mxu0 0.0
    %1365 = vmatpush.msra.mxu0 0.0
    %1366 = vmatpush.msra.mxu0 0.0
    %1367 = vmatpush.msra.mxu0 0.0
    %1368 = vmatpush.msra.mxu0 0.0
    %1369 = vmatpush.msra.mxu0 0.0
    %1370 = vmatpush.msra.mxu0 %v1347
    %1371 = vmatpush.msra.mxu0 %v1345
    %1372 = vmatmul.f32.gmra.mxu0 %v1351
    %v1373 = vpop.f32.mrf.mxu0
    %v1374 = vadd.f32 0.0, %v1373
    %1375 = vmatmul.f32.gmra.mxu0 %v1354
    %v1376 = vpop.f32.mrf.mxu0
    %v1377 = vadd.f32 0.0, %v1376
    %1378 = vdwg.mxu0
    %1379 = vrot.lane.b32.xlu0 %v1027, 64
    %v1380 = vpop.permute.xlu0 %1379
    %1381 = vrot.lane.b32.xlu0 %v1029, 64
    %v1382 = vpop.permute.xlu0 %1381
    %v1386 = vsel %vm333, %v1272, 0
    %v1389 = vsel %vm333, %v1273, 0
    %1391 = vmatpush.msra.mxu0 0.0
    %1392 = vmatpush.msra.mxu0 0.0
    %1393 = vmatpush.msra.mxu0 0.0
    %1394 = vmatpush.msra.mxu0 0.0
    %1395 = vmatpush.msra.mxu0 0.0
    %1396 = vmatpush.msra.mxu0 0.0
    %1397 = vmatpush.msra.mxu0 0.0
    %1398 = vmatpush.msra.mxu0 0.0
    %1399 = vmatpush.msra.mxu0 0.0
    %1400 = vmatpush.msra.mxu0 0.0
    %1401 = vmatpush.msra.mxu0 0.0
    %1402 = vmatpush.msra.mxu0 0.0
    %1403 = vmatpush.msra.mxu0 0.0
    %1404 = vmatpush.msra.mxu0 0.0
    %1405 = vmatpush.msra.mxu0 %v1382
    %1406 = vmatpush.msra.mxu0 %v1380
    %1407 = vmatmul.f32.gmra.mxu0 %v1386
    %v1408 = vpop.f32.mrf.mxu0
    %v1409 = vadd.f32 0.0, %v1408
    %1410 = vmatmul.f32.gmra.mxu0 %v1389
    %v1411 = vpop.f32.mrf.mxu0
    %v1412 = vadd.f32 0.0, %v1411
    %1413 = vdwg.mxu0
    %s1414 = scalar_lea.vmem %s7, 32
    %v1415 = vld [vmem:[%s1414] sm:$0xff]
    %v1416 = vld [vmem:[%s1414 + $0x8] sm:$0xff]
    %v1417 = vld [vmem:[%s1414 + $0x10] sm:$0xff]
    %v1418 = vld [vmem:[%s1414 + $0x18] sm:$0xff]
    %v1420 = vsel %vm180, %v1304, 0
    %v1423 = vsel %vm180, %v1307, 0
    %1425 = vmatpush.msra.mxu0 0.0
    %1426 = vmatpush.msra.mxu0 0.0
    %1427 = vmatpush.msra.mxu0 0.0
    %1428 = vmatpush.msra.mxu0 0.0
    %1429 = vmatpush.msra.mxu0 0.0
    %1430 = vmatpush.msra.mxu0 0.0
    %1431 = vmatpush.msra.mxu0 0.0
    %1432 = vmatpush.msra.mxu0 0.0
    %1433 = vmatpush.msra.mxu0 0.0
    %1434 = vmatpush.msra.mxu0 0.0
    %1435 = vmatpush.msra.mxu0 0.0
    %1436 = vmatpush.msra.mxu0 0.0
    %1437 = vmatpush.msra.mxu0 0.0
    %1438 = vmatpush.msra.mxu0 0.0
    %1439 = vmatpush.msra.mxu0 0.0
    %1440 = vmatpush.msra.mxu0 %v1415
    %1441 = vmatmul.f32.gmra.mxu0 %v1420
    %v1442 = vpop.f32.mrf.mxu0
    %v1443 = vadd.f32 0.0, %v1442
    %1444 = vmatmul.f32.gmra.mxu0 %v1423
    %v1445 = vpop.f32.mrf.mxu0
    %v1446 = vadd.f32 0.0, %v1445
    %1447 = vdwg.mxu0
    %v1449 = vsel %vm180, %v1339, 0
    %v1452 = vsel %vm180, %v1342, 0
    %1454 = vmatpush.msra.mxu0 0.0
    %1455 = vmatpush.msra.mxu0 0.0
    %1456 = vmatpush.msra.mxu0 0.0
    %1457 = vmatpush.msra.mxu0 0.0
    %1458 = vmatpush.msra.mxu0 0.0
    %1459 = vmatpush.msra.mxu0 0.0
    %1460 = vmatpush.msra.mxu0 0.0
    %1461 = vmatpush.msra.mxu0 0.0
    %1462 = vmatpush.msra.mxu0 0.0
    %1463 = vmatpush.msra.mxu0 0.0
    %1464 = vmatpush.msra.mxu0 0.0
    %1465 = vmatpush.msra.mxu0 0.0
    %1466 = vmatpush.msra.mxu0 0.0
    %1467 = vmatpush.msra.mxu0 0.0
    %1468 = vmatpush.msra.mxu0 0.0
    %1469 = vmatpush.msra.mxu0 %v1416
    %1470 = vmatmul.f32.gmra.mxu0 %v1449
    %v1471 = vpop.f32.mrf.mxu0
    %v1472 = vadd.f32 0.0, %v1471
    %1473 = vmatmul.f32.gmra.mxu0 %v1452
    %v1474 = vpop.f32.mrf.mxu0
    %v1475 = vadd.f32 0.0, %v1474
    %1476 = vdwg.mxu0
    %v1478 = vsel %vm180, %v1374, 0
    %v1481 = vsel %vm180, %v1377, 0
    %1483 = vmatpush.msra.mxu0 0.0
    %1484 = vmatpush.msra.mxu0 0.0
    %1485 = vmatpush.msra.mxu0 0.0
    %1486 = vmatpush.msra.mxu0 0.0
    %1487 = vmatpush.msra.mxu0 0.0
    %1488 = vmatpush.msra.mxu0 0.0
    %1489 = vmatpush.msra.mxu0 0.0
    %1490 = vmatpush.msra.mxu0 0.0
    %1491 = vmatpush.msra.mxu0 0.0
    %1492 = vmatpush.msra.mxu0 0.0
    %1493 = vmatpush.msra.mxu0 0.0
    %1494 = vmatpush.msra.mxu0 0.0
    %1495 = vmatpush.msra.mxu0 0.0
    %1496 = vmatpush.msra.mxu0 0.0
    %1497 = vmatpush.msra.mxu0 0.0
    %1498 = vmatpush.msra.mxu0 %v1417
    %1499 = vmatmul.f32.gmra.mxu0 %v1478
    %v1500 = vpop.f32.mrf.mxu0
    %v1501 = vadd.f32 0.0, %v1500
    %1502 = vmatmul.f32.gmra.mxu0 %v1481
    %v1503 = vpop.f32.mrf.mxu0
    %v1504 = vadd.f32 0.0, %v1503
    %1505 = vdwg.mxu0
    %v1507 = vsel %vm180, %v1409, 0
    %v1510 = vsel %vm180, %v1412, 0
    %1512 = vmatpush.msra.mxu0 0.0
    %1513 = vmatpush.msra.mxu0 0.0
    %1514 = vmatpush.msra.mxu0 0.0
    %1515 = vmatpush.msra.mxu0 0.0
    %1516 = vmatpush.msra.mxu0 0.0
    %1517 = vmatpush.msra.mxu0 0.0
    %1518 = vmatpush.msra.mxu0 0.0
    %1519 = vmatpush.msra.mxu0 0.0
    %1520 = vmatpush.msra.mxu0 0.0
    %1521 = vmatpush.msra.mxu0 0.0
    %1522 = vmatpush.msra.mxu0 0.0
    %1523 = vmatpush.msra.mxu0 0.0
    %1524 = vmatpush.msra.mxu0 0.0
    %1525 = vmatpush.msra.mxu0 0.0
    %1526 = vmatpush.msra.mxu0 0.0
    %1527 = vmatpush.msra.mxu0 %v1418
    %1528 = vmatmul.f32.gmra.mxu0 %v1507
    %v1529 = vpop.f32.mrf.mxu0
    %v1530 = vadd.f32 0.0, %v1529
    %1531 = vmatmul.f32.gmra.mxu0 %v1510
    %v1532 = vpop.f32.mrf.mxu0
    %v1533 = vadd.f32 0.0, %v1532
    %1534 = vdwg.mxu0
    %v1535 = vsel %vm61, %v1443, 0.0
    %v1536 = vsel %vm61, %v1472, 0.0
    %v1537 = vadd.f32 %v1535, %v1536
    %v1538 = vsel %vm61, %v1501, 0.0
    %v1539 = vadd.f32 %v1537, %v1538
    %v1540 = vsel %vm61, %v1530, 0.0
    %v1541 = vadd.f32 %v1539, %v1540
    %v1542 = vsel %vm61, %v1446, 0.0
    %v1543 = vsel %vm61, %v1475, 0.0
    %v1544 = vadd.f32 %v1542, %v1543
    %v1545 = vsel %vm61, %v1504, 0.0
    %v1546 = vadd.f32 %v1544, %v1545
    %v1547 = vsel %vm61, %v1533, 0.0
    %v1548 = vadd.f32 %v1546, %v1547
    %s1549 = scalar_lea.vmem %s8, 1
    %v1550 = vld [vmem:[%s1549] sm:$0x1]
    %v1552 = vperm.slane %v1550, 0
    %v1554 = vadd.f32 %v1541, %v1552
    %v1555 = vadd.f32 %v1548, %v1552
    %v1556 = vadd.f32 %v975, %v1554
    %v1557 = vadd.f32 %v976, %v1555
    %s1558 = scalar_lea.vmem %s13, 1
    %v1559 = vld [vmem:[%s1558] sm:$0x1]
    %s1560 = scalar_lea.vmem %s14, 1
    %v1561 = vld [vmem:[%s1560] sm:$0x1]
    %v1562 = vsel %vm61, %v1556, 0.0
    %1563 = vadd.xlane.f32.xlu0 %v1562
    %v1564 = vpop.xlane.xlu0 %1563
    %v1565 = vsel %vm61, %v1557, 0.0
    %1566 = vadd.xlane.f32.xlu0 %v1565
    %v1567 = vpop.xlane.xlu0 %1566
    %v1568 = vmul.f32 %v1564, %v74
    %v1569 = vmul.f32 %v1567, %v74
    %v1570 = vsub.f32 %v1556, %v1568
    %v1571 = vsub.f32 %v1557, %v1569
    %v1572 = vmul.f32 %v1570, %v1570
    %v1573 = vmul.f32 %v1571, %v1571
    %v1574 = vsel %vm61, %v1572, 0.0
    %1575 = vadd.xlane.f32.xlu0 %v1574
    %v1576 = vpop.xlane.xlu0 %1575
    %v1577 = vsel %vm61, %v1573, 0.0
    %1578 = vadd.xlane.f32.xlu0 %v1577
    %v1579 = vpop.xlane.xlu0 %1578
    %v1580 = vmul.f32 %v1576, %v74
    %v1581 = vmul.f32 %v1579, %v74
    %v1582 = vadd.f32 %v1580, 1e-12
    %v1583 = vadd.f32 %v1581, 1e-12
    %v1584 = vrsqrt.pop %v1582
    %v1585 = vmul.f32 %v1584, %v1582
    %v1586 = vmul.f32 %v1585, %v1584
    %v1587 = vmul.f32 0.5, %v1586
    %v1588 = vsub.f32 1.5, %v1587
    %v1589 = vmul.f32 %v1584, %v1588
    %vm1590 = vweird.f32 %v1582
    %vm1591 = vweird.f32 %v1584
    %vm1592 = vmor %vm1590, %vm1591
    %v1593 = vsel %vm1592, %v1584, %v1589
    %v1594 = vrsqrt.pop %v1583
    %v1595 = vmul.f32 %v1594, %v1583
    %v1596 = vmul.f32 %v1595, %v1594
    %v1597 = vmul.f32 0.5, %v1596
    %v1598 = vsub.f32 1.5, %v1597
    %v1599 = vmul.f32 %v1594, %v1598
    %vm1600 = vweird.f32 %v1583
    %vm1601 = vweird.f32 %v1594
    %vm1602 = vmor %vm1600, %vm1601
    %v1603 = vsel %vm1602, %v1594, %v1599
    %v1604 = vmul.f32 %v1570, %v1593
    %v1605 = vmul.f32 %v1571, %v1603
    %v1607 = vperm.slane %v1559, 0
    %v1609 = vmul.f32 %v1604, %v1607
    %v1610 = vmul.f32 %v1605, %v1607
    %v1612 = vperm.slane %v1561, 0
    %v1614 = vadd.f32 %v1609, %v1612
    %v1615 = vadd.f32 %v1610, %v1612
    %s1616 = scalar_lea.vmem %s9, 32
    %v1617 = vld [vmem:[%s1616] sm:$0xff]
    %v1618 = vld [vmem:[%s1616 + $0x8] sm:$0xff]
    %v1619 = vld [vmem:[%s1616 + $0x10] sm:$0xff]
    %v1620 = vld [vmem:[%s1616 + $0x18] sm:$0xff]
    %s1621 = scalar_lea.vmem %s10, 1
    %v1622 = vld [vmem:[%s1621] sm:$0x1]
    %v1624 = vperm.slane %v1622, 0
    %v1627 = vsel %vm61, %v1614, 0
    %v1630 = vsel %vm61, %v1615, 0
    %1632 = vmatpush.msra.mxu0 0.0
    %1633 = vmatpush.msra.mxu0 0.0
    %1634 = vmatpush.msra.mxu0 0.0
    %1635 = vmatpush.msra.mxu0 0.0
    %1636 = vmatpush.msra.mxu0 0.0
    %1637 = vmatpush.msra.mxu0 0.0
    %1638 = vmatpush.msra.mxu0 0.0
    %1639 = vmatpush.msra.mxu0 0.0
    %1640 = vmatpush.msra.mxu0 0.0
    %1641 = vmatpush.msra.mxu0 0.0
    %1642 = vmatpush.msra.mxu0 0.0
    %1643 = vmatpush.msra.mxu0 0.0
    %1644 = vmatpush.msra.mxu0 %v1620
    %1645 = vmatpush.msra.mxu0 %v1619
    %1646 = vmatpush.msra.mxu0 %v1618
    %1647 = vmatpush.msra.mxu0 %v1617
    %1648 = vmatmul.f32.gmra.mxu0 %v1627
    %v1649 = vpop.f32.mrf.mxu0
    %v1650 = vadd.f32 %v1624, %v1649
    %1651 = vmatmul.f32.gmra.mxu0 %v1630
    %v1652 = vpop.f32.mrf.mxu0
    %v1653 = vadd.f32 %v1624, %v1652
    %1654 = vdwg.mxu0
    %v1655 = vmul.f32 %v1650, 0.5
    %v1656 = vmul.f32 %v1653, 0.5
    %v1657 = vmul.f32 %v1650, 0.70710677
    %v1658 = vmul.f32 %v1653, 0.70710677
    %vm1659 = vcmp.ge.f32.partialorder %v1657, 0.0
    %vm1660 = vcmp.ge.f32.partialorder %v1658, 0.0
    %v1661 = vsel %vm1659, 1.0, -1.0
    %v1662 = vsel %vm1660, 1.0, -1.0
    %v1663 = vand.u32 2147483647, %v1657
    %v1664 = vand.u32 2147483647, %v1658
    %v1665 = vmul.f32 %v1663, 0.3275911
    %v1666 = vmul.f32 %v1664, 0.3275911
    %v1667 = vadd.f32 %v1665, 1.0
    %v1668 = vadd.f32 %v1666, 1.0
    %v1669 = vrcp.pop %v1667
    %v1670 = vmul.f32 %v1667, %v1669
    %v1671 = vsub.f32 1.0, %v1670
    %v1672 = vmul.f32 %v1669, %v1671
    %v1673 = vadd.f32 %v1669, %v1672
    %vm1674 = vweird.f32 %v1667
    %vm1675 = vweird.f32 %v1669
    %vm1676 = vmor %vm1674, %vm1675
    %v1677 = vsel %vm1676, %v1669, %v1673
    %v1678 = vand.u32 2147483647, %v1667
    %vm1679 = vcmp.eq.f32.partialorder %v1678, 8.507059e+37
    %v1680 = vand.u32 %v1667, 2147483648
    %v1681 = vor.u32 1.1754944e-38, %v1680
    %v1682 = vsel %vm1679, %v1681, %v1677
    %v1683 = vmul.f32 1.0, %v1682
    %v1684 = vrcp.pop %v1668
    %v1685 = vmul.f32 %v1668, %v1684
    %v1686 = vsub.f32 1.0, %v1685
    %v1687 = vmul.f32 %v1684, %v1686
    %v1688 = vadd.f32 %v1684, %v1687
    %vm1689 = vweird.f32 %v1668
    %vm1690 = vweird.f32 %v1684
    %vm1691 = vmor %vm1689, %vm1690
    %v1692 = vsel %vm1691, %v1684, %v1688
    %v1693 = vand.u32 2147483647, %v1668
    %vm1694 = vcmp.eq.f32.partialorder %v1693, 8.507059e+37
    %v1695 = vand.u32 %v1668, 2147483648
    %v1696 = vor.u32 1.1754944e-38, %v1695
    %v1697 = vsel %vm1694, %v1696, %v1692
    %v1698 = vmul.f32 1.0, %v1697
    %v1699 = vmul.f32 %v1683, 1.0614054
    %v1700 = vmul.f32 %v1698, 1.0614054
    %v1701 = vadd.f32 %v1699, -1.4531521
    %v1702 = vadd.f32 %v1700, -1.4531521
    %v1703 = vmul.f32 %v1701, %v1683
    %v1704 = vmul.f32 %v1702, %v1698
    %v1705 = vadd.f32 %v1703, 1.4214138
    %v1706 = vadd.f32 %v1704, 1.4214138
    %v1707 = vmul.f32 %v1705, %v1683
    %v1708 = vmul.f32 %v1706, %v1698
    %v1709 = vadd.f32 %v1707, -0.28449672
    %v1710 = vadd.f32 %v1708, -0.28449672
    %v1711 = vmul.f32 %v1709, %v1683
    %v1712 = vmul.f32 %v1710, %v1698
    %v1713 = vadd.f32 %v1711, 0.2548296
    %v1714 = vadd.f32 %v1712, 0.2548296
    %v1715 = vmul.f32 %v1713, %v1683
    %v1716 = vmul.f32 %v1714, %v1698
    %v1717 = vsub.f32 0.0, %v1663
    %v1718 = vsub.f32 0.0, %v1664
    %v1719 = vmul.f32 %v1717, %v1663
    %v1720 = vmul.f32 %v1718, %v1664
    %v1721 = vmul.f32 %v1719, 1.442695
    %v1722 = vpow.pop %v1721
    %v1723 = vmul.f32 %v1720, 1.442695
    %v1724 = vpow.pop %v1723
    %v1725 = vmul.f32 %v1715, %v1722
    %v1726 = vmul.f32 %v1716, %v1724
    %v1727 = vsub.f32 1.0, %v1725
    %v1728 = vsub.f32 1.0, %v1726
    %v1729 = vmul.f32 %v1661, %v1727
    %v1730 = vmul.f32 %v1662, %v1728
    %v1731 = vadd.f32 %v1729, 1.0
    %v1732 = vadd.f32 %v1730, 1.0
    %v1733 = vmul.f32 %v1655, %v1731
    %v1734 = vmul.f32 %v1656, %v1732
    %s1735 = scalar_lea.vmem %s11, 64
    %v1736 = vld [vmem:[%s1735] sm:$0xff]
    %v1737 = vld [vmem:[%s1735 + $0x8] sm:$0xff]
    %v1738 = vld [vmem:[%s1735 + $0x10] sm:$0xff]
    %v1739 = vld [vmem:[%s1735 + $0x18] sm:$0xff]
    %v1740 = vld [vmem:[%s1735 + $0x20] sm:$0xff]
    %v1741 = vld [vmem:[%s1735 + $0x28] sm:$0xff]
    %v1742 = vld [vmem:[%s1735 + $0x30] sm:$0xff]
    %v1743 = vld [vmem:[%s1735 + $0x38] sm:$0xff]
    %s1744 = scalar_lea.vmem %s12, 1
    %v1745 = vld [vmem:[%s1744] sm:$0x1]
    %v1747 = vperm.slane %v1745, 0
    %v1750 = vsel %vm889, %v1733, 0
    %v1753 = vsel %vm889, %v1734, 0
    %1755 = vmatpush.msra.mxu0 0.0
    %1756 = vmatpush.msra.mxu0 0.0
    %1757 = vmatpush.msra.mxu0 0.0
    %1758 = vmatpush.msra.mxu0 0.0
    %1759 = vmatpush.msra.mxu0 0.0
    %1760 = vmatpush.msra.mxu0 0.0
    %1761 = vmatpush.msra.mxu0 0.0
    %1762 = vmatpush.msra.mxu0 0.0
    %1763 = vmatpush.msra.mxu0 %v1743
    %1764 = vmatpush.msra.mxu0 %v1742
    %1765 = vmatpush.msra.mxu0 %v1741
    %1766 = vmatpush.msra.mxu0 %v1740
    %1767 = vmatpush.msra.mxu0 %v1739
    %1768 = vmatpush.msra.mxu0 %v1738
    %1769 = vmatpush.msra.mxu0 %v1737
    %1770 = vmatpush.msra.mxu0 %v1736
    %1771 = vmatmul.f32.gmra.mxu0 %v1750
    %v1772 = vpop.f32.mrf.mxu0
    %v1773 = vadd.f32 %v1747, %v1772
    %1774 = vmatmul.f32.gmra.mxu0 %v1753
    %v1775 = vpop.f32.mrf.mxu0
    %v1776 = vadd.f32 %v1747, %v1775
    %1777 = vdwg.mxu0
    %v1778 = vadd.f32 %v1614, %v1773
    %v1779 = vadd.f32 %v1615, %v1776
    %s1780 = scalar_lea.vmem %s15, 1
    %v1781 = vld [vmem:[%s1780] sm:$0x1]
    %s1782 = scalar_lea.vmem %s16, 1
    %v1783 = vld [vmem:[%s1782] sm:$0x1]
    %v1784 = vsel %vm61, %v1778, 0.0
    %1785 = vadd.xlane.f32.xlu0 %v1784
    %v1786 = vpop.xlane.xlu0 %1785
    %v1787 = vsel %vm61, %v1779, 0.0
    %1788 = vadd.xlane.f32.xlu0 %v1787
    %v1789 = vpop.xlane.xlu0 %1788
    %v1790 = vmul.f32 %v1786, %v74
    %v1791 = vmul.f32 %v1789, %v74
    %v1792 = vsub.f32 %v1778, %v1790
    %v1793 = vsub.f32 %v1779, %v1791
    %v1794 = vmul.f32 %v1792, %v1792
    %v1795 = vmul.f32 %v1793, %v1793
    %v1796 = vsel %vm61, %v1794, 0.0
    %1797 = vadd.xlane.f32.xlu0 %v1796
    %v1798 = vpop.xlane.xlu0 %1797
    %v1799 = vsel %vm61, %v1795, 0.0
    %1800 = vadd.xlane.f32.xlu0 %v1799
    %v1801 = vpop.xlane.xlu0 %1800
    %v1802 = vmul.f32 %v1798, %v74
    %v1803 = vmul.f32 %v1801, %v74
    %v1804 = vadd.f32 %v1802, 1e-12
    %v1805 = vadd.f32 %v1803, 1e-12
    %v1806 = vrsqrt.pop %v1804
    %v1807 = vmul.f32 %v1806, %v1804
    %v1808 = vmul.f32 %v1807, %v1806
    %v1809 = vmul.f32 0.5, %v1808
    %v1810 = vsub.f32 1.5, %v1809
    %v1811 = vmul.f32 %v1806, %v1810
    %vm1812 = vweird.f32 %v1804
    %vm1813 = vweird.f32 %v1806
    %vm1814 = vmor %vm1812, %vm1813
    %v1815 = vsel %vm1814, %v1806, %v1811
    %v1816 = vrsqrt.pop %v1805
    %v1817 = vmul.f32 %v1816, %v1805
    %v1818 = vmul.f32 %v1817, %v1816
    %v1819 = vmul.f32 0.5, %v1818
    %v1820 = vsub.f32 1.5, %v1819
    %v1821 = vmul.f32 %v1816, %v1820
    %vm1822 = vweird.f32 %v1805
    %vm1823 = vweird.f32 %v1816
    %vm1824 = vmor %vm1822, %vm1823
    %v1825 = vsel %vm1824, %v1816, %v1821
    %v1826 = vmul.f32 %v1792, %v1815
    %v1827 = vmul.f32 %v1793, %v1825
    %v1829 = vperm.slane %v1781, 0
    %v1831 = vmul.f32 %v1826, %v1829
    %v1832 = vmul.f32 %v1827, %v1829
    %v1834 = vperm.slane %v1783, 0
    %v1836 = vadd.f32 %v1831, %v1834
    %v1837 = vadd.f32 %v1832, %v1834
    %v1838 = vld [vmem:[%s2] sm:$0x3]
    %v1840 = vsel %vm333, %v1838, 0
    %1842 = vmatpush.msra.mxu0 0.0
    %1843 = vmatpush.msra.mxu0 0.0
    %1844 = vmatpush.msra.mxu0 0.0
    %1845 = vmatpush.msra.mxu0 0.0
    %1846 = vmatpush.msra.mxu0 0.0
    %1847 = vmatpush.msra.mxu0 0.0
    %1848 = vmatpush.msra.mxu0 0.0
    %1849 = vmatpush.msra.mxu0 0.0
    %1850 = vmatpush.msra.mxu0 0.0
    %1851 = vmatpush.msra.mxu0 0.0
    %1852 = vmatpush.msra.mxu0 0.0
    %1853 = vmatpush.msra.mxu0 0.0
    %1854 = vmatpush.msra.mxu0 0.0
    %1855 = vmatpush.msra.mxu0 0.0
    %1856 = vmatpush.msra.mxu0 %v1837
    %1857 = vmatpush.msra.mxu0 %v1836
    %1858 = vmatmul.f32.gmra.mxu0 %v1840
    %v1859 = vpop.f32.mrf.mxu0
    %v1860 = vadd.f32 0.0, %v1859
    %1861 = vdwg.mxu0
    %vm1862 = vcmask 123904
    %v1863 = vsel %vm1862, %v1838, 0.0
    %1864 = vadd.xlane.f32.xlu0 %v1863
    %v1865 = vpop.xlane.xlu0 %1864
    %v1866 = vmax.f32 %v1865, 1e-09
    %v1867 = vrcp.pop %v1866
    %v1868 = vmul.f32 %v1860, %v1867
    %v1869 = vmul.f32 %v1868, %v1868
    %vm1870 = vcmask 254976
    %v1871 = vsel %vm1870, %v1869, 0.0
    %1872 = vadd.xlane.f32.xlu0 %v1871
    %v1873 = vpop.xlane.xlu0 %1872
    %v1874 = vrsqrt.pop %v1873
    %v1875 = vmul.f32 %v1874, %v1873
    %v1876 = vmul.f32 %v1875, %v1874
    %v1877 = vmul.f32 0.5, %v1876
    %v1878 = vsub.f32 1.5, %v1877
    %v1879 = vmul.f32 %v1874, %v1878
    %v1880 = vmul.f32 %v1873, %v1879
    %vm1881 = vcmp.eq.f32.partialorder %v1873, inf
    %v1882 = vsel %vm1881, %v1873, %v1880
    %vm1883 = vcmp.eq.f32.partialorder %v1873, 0.0
    %v1884 = vand.u32 %v1873, 2147483648
    %v1885 = vsel %vm1883, %v1884, %v1882
    %v1886 = vmax.f32 %v1885, 1e-12
    %v1887 = vrcp.pop %v1886
    %v1888 = vmul.f32 %v1886, %v1887
    %v1889 = vsub.f32 1.0, %v1888
    %v1890 = vmul.f32 %v1887, %v1889
    %v1891 = vadd.f32 %v1887, %v1890
    %vm1892 = vweird.f32 %v1886
    %vm1893 = vweird.f32 %v1887
    %vm1894 = vmor %vm1892, %vm1893
    %v1895 = vsel %vm1894, %v1887, %v1891
    %v1896 = vand.u32 2147483647, %v1886
    %vm1897 = vcmp.eq.f32.partialorder %v1896, 8.507059e+37
    %v1898 = vand.u32 %v1886, 2147483648
    %v1899 = vor.u32 1.1754944e-38, %v1898
    %v1900 = vsel %vm1897, %v1899, %v1895
    %v1901 = vmul.f32 %v1868, %v1900
    %1902 = vst.msk [vmem:[#allocation2] sm:$0x3] %vm1870, %v1901
    // Predicated region
    $region70: #{text_encoder_forward.1} parent=1 // pred_check
      _
    $region71: #{text_encoder_forward.1} parent=1 // pred_check_branch
      %1904 = sbr.rel (0) target = $region73
    $region72: #{text_encoder_forward.1} parent=1 // pred_region
      %1906 = vsyncadd [#allocation3], 0
      %s1908 = sshll.u32 [#allocation2], 4
      %s1909 = int_to_ptr.vmem [resolvable:$true] %s1908
      %s1910 = sshll.u32 %s17, 4
      %s1911 = int_to_ptr.hbm [resolvable:$true] %s1910
      %1913 = dma.vmem_to_hbm [thread:$0]  %s1909, 32, %s1911, [#allocation3]
    $region73: #{text_encoder_forward.1} parent=1 // pred_fallthru
      _
    // Predicated region
    $region74: #{text_encoder_forward.1} parent=1 // pred_check
      _
    $region75: #{text_encoder_forward.1} parent=1 // pred_check_branch
      %1915 = sbr.rel (0) target = $region77
    $region76: #{text_encoder_forward.1} parent=1 // pred_region
      %1917 = dma.done [#allocation3], 32
    $region77: #{text_encoder_forward.1} parent=1 // pred_fallthru
      _
    %1918 = vsyncpa [#allocation3], 1

</llo_original>
